<compile_context>
chip_gen: v7x
topology: tpu7x:2x2x1
jax: 0.10.0
libtpu: 0.0.40
codegen_flags: <defaults>
</compile_context>

<pallas_src>
import functools

import jax
import jax.numpy as jnp
from jax.experimental import pallas as pl
from jax.experimental.pallas import tpu as pltpu

HIDDEN_LOGICAL = 40    # hard-coded in the PyTorch module
HIDDEN_PADDED = 128    # lane-dense padding for TPU
MAX_TILE_B = 8192      # VMEM-safe on v5e/v6e/v7x (see header comment)


def _num_tensorcores():
    """Best-effort TensorCore count per chip (2 on v7x, else 1)."""
    try:
        d = jax.devices()[0]
        kind = (getattr(d, "device_kind", "") or "").lower()
        if "v7" in kind:
            return 2
        nc = getattr(d, "num_cores", None)
        if nc:
            return int(nc)
    except Exception:
        pass
    return 1


def _pick_tile_b(B, num_tc, max_tile=MAX_TILE_B):
    """Batch tile: as few grid steps as possible, lane-dense, VMEM-capped."""
    target = min(pl.cdiv(B, num_tc), max_tile)
    tb = ((target + 127) // 128) * 128      # batch lives on the lane axis
    if tb >= B:
        return B                             # single full-extent block (always legal)
    return tb


def actor_kernel(xT_ref, w1t_ref, b1_ref, w2t_ref, b2_ref, w3t_ref, b3_ref,
                 oT_ref, *, two_class):
    # Everything is transposed: batch on the lane axis, features on sublanes.
    # hidden1 + ReLU:  (128, in_dim) @ (in_dim, tb) -> (128, tb)
    h1 = jnp.dot(w1t_ref[...], xT_ref[...], preferred_element_type=jnp.float32)
    h1 = jnp.maximum(h1 + b1_ref[...], 0.0)
    # hidden2 + ReLU:  (128, 128) @ (128, tb) -> (128, tb)   (zero pads are exact no-ops)
    h2 = jnp.dot(w2t_ref[...], h1, preferred_element_type=jnp.float32)
    h2 = jnp.maximum(h2 + b2_ref[...], 0.0)
    # action head:     (out_dim, 128) @ (128, tb) -> (out_dim, tb)
    logits = jnp.dot(w3t_ref[...], h2, preferred_element_type=jnp.float32)
    logits = logits + b3_ref[...]

    if two_class:
        # The wrapper pre-folded the head into "difference" form
        #   row0 = w3[:,0]-w3[:,1], row1 = w3[:,1]-w3[:,0] (same for bias),
        # so softmax over 2 classes == elementwise sigmoid(logits).
        # Pure MXU + EUP exp + VPU: no lane slices, no concat, no XLU reductions.
        oT_ref[...] = pl.reciprocal(1.0 + jnp.exp(-logits), approx=False)
    else:
        # general, numerically stable softmax over the class (sublane) axis
        m = jnp.max(logits, axis=0, keepdims=True)
        e = jnp.exp(logits - m)
        oT_ref[...] = e * pl.reciprocal(jnp.sum(e, axis=0, keepdims=True),
                                        approx=False)


def actor_forward(x, prepared_params, *, max_tile_b=MAX_TILE_B):
    """x: [B, input_dim] f32; prepared_params: transposed+padded weights."""
    w1t, b1t, w2t, b2t, w3t, b3t = prepared_params
    B, in_dim = x.shape
    out_dim = w3t.shape[0]
    two_class = (out_dim == 2)

    num_tc = _num_tensorcores()
    tb = _pick_tile_b(B, num_tc, max_tile_b)
    grid = (pl.cdiv(B, tb),)

    xT = x.T                                  # (in_dim, B): batch on lanes

    col_map = lambda i: (0, i)                # tile over batch (lane axis)
    const_map = lambda i: (0, 0)              # weights resident across grid

    kernel = functools.partial(actor_kernel, two_class=two_class)
    outT = pl.pallas_call(
        kernel,
        out_shape=jax.ShapeDtypeStruct((out_dim, B), jnp.float32),
        grid=grid,
        in_specs=[
            pl.BlockSpec((in_dim, tb), col_map),       # x^T tile  [in, tb]
            pl.BlockSpec(w1t.shape, const_map),        # w1^T      [128, in]
            pl.BlockSpec(b1t.shape, const_map),        # b1        [128, 1]
            pl.BlockSpec(w2t.shape, const_map),        # w2^T      [128, 128]
            pl.BlockSpec(b2t.shape, const_map),        # b2        [128, 1]
            pl.BlockSpec(w3t.shape, const_map),        # w3^T/head [out, 128]
            pl.BlockSpec(b3t.shape, const_map),        # b3/head   [out, 1]
        ],
        out_specs=pl.BlockSpec((out_dim, tb), col_map),  # lane-dense store
        compiler_params=pltpu.CompilerParams(
            dimension_semantics=("parallel",)),          # 2 TCs on v7x
    )(xT, w1t, b1t, w2t, b2t, w3t, b3t)

    return outT.T                              # back to (B, out_dim)


def init_actor_params(key, input_dim, output_dim, hidden=HIDDEN_LOGICAL):
    # Deterministic init mimicking nn.Linear default (uniform +/- 1/sqrt(fan_in)).
    ks = jax.random.split(key, 6)

    def linear(kw, kb, fan_in, fan_out):
        bound = 1.0 / jnp.sqrt(jnp.float32(fan_in))
        w = jax.random.uniform(kw, (fan_in, fan_out), jnp.float32, -bound, bound)
        b = jax.random.uniform(kb, (1, fan_out), jnp.float32, -bound, bound)
        return w, b

    w1, b1 = linear(ks[0], ks[1], input_dim, hidden)
    w2, b2 = linear(ks[2], ks[3], hidden, hidden)
    w3, b3 = linear(ks[4], ks[5], hidden, output_dim)
    return (w1, b1, w2, b2, w3, b3)


def prepare_actor_params(params, lane=HIDDEN_PADDED):
    """Transpose to batch-on-lanes form, zero-pad hidden to 128 (exact),
    and fold the 2-class softmax into a sigmoid 'difference' head."""
    w1, b1, w2, b2, w3, b3 = params            # w: (fan_in, fan_out), b: (1, fan_out)
    h = w1.shape[1]
    ph = lane - h
    out_dim = w3.shape[1]

    w1t = jnp.pad(w1.T, ((0, ph), (0, 0)))     # (128, in_dim)
    b1t = jnp.pad(b1.T, ((0, ph), (0, 0)))     # (128, 1)
    w2t = jnp.pad(w2.T, ((0, ph), (0, ph)))    # (128, 128)
    b2t = jnp.pad(b2.T, ((0, ph), (0, 0)))     # (128, 1)
    w3t = jnp.pad(w3.T, ((0, 0), (0, ph)))     # (out_dim, 128)
    b3t = b3.T                                 # (out_dim, 1)

    if out_dim == 2:
        # softmax([l0, l1]) == [sigmoid(l0-l1), sigmoid(l1-l0)]
        w3t = jnp.stack([w3t[0] - w3t[1], w3t[1] - w3t[0]], axis=0)
        b3t = jnp.stack([b3t[0] - b3t[1], b3t[1] - b3t[0]], axis=0)
    return (w1t, b1t, w2t, b2t, w3t, b3t)


def actor_forward_ref(x, params):
    # Plain-JAX reference (unpadded, logical hidden=40) for sanity checking.
    w1, b1, w2, b2, w3, b3 = params
    h1 = jnp.maximum(x @ w1 + b1, 0.0)
    h2 = jnp.maximum(h1 @ w2 + b2, 0.0)
    return jax.nn.softmax(h2 @ w3 + b3, axis=-1)


# TODO(synk): choose_action (Categorical sampling) and backprop/Adam are
# training/host-side logic, not part of the forward pass, and are not ported.

if __name__ == "__main__":
    key = jax.random.PRNGKey(0)
    k_x, k_p = jax.random.split(key)

    # CartPole-v0: observation dim = 4, action dim = 2.
    B, input_dim, output_dim = 1024, 4, 2
    x = jax.random.normal(k_x, (B, input_dim), dtype=jnp.float32)

    params = init_actor_params(k_p, input_dim, output_dim)   # logical (hidden=40)
    prepared = prepare_actor_params(params)                  # transposed + padded

    fwd = jax.jit(actor_forward)                             # trace/lower once
    probs = jax.block_until_ready(fwd(x, prepared))

    ref = actor_forward_ref(x, params)
    assert probs.shape == (B, output_dim)
    assert jnp.allclose(probs, ref, atol=1e-5, rtol=1e-5)
    assert jnp.allclose(jnp.sum(probs, axis=-1), 1.0, atol=1e-5)

    print("KERNEL_OK")
</pallas_src>

<mosaic_0001>
module attributes {stable_mosaic.version = 11 : i64} {
  func.func @actor_kernel(%arg0: i32, %arg1: memref<4x1024xf32, #tpu.memory_space<vmem>>, %arg2: memref<128x4xf32, #tpu.memory_space<vmem>>, %arg3: memref<128x1xf32, #tpu.memory_space<vmem>>, %arg4: memref<128x128xf32, #tpu.memory_space<vmem>>, %arg5: memref<128x1xf32, #tpu.memory_space<vmem>>, %arg6: memref<2x128xf32, #tpu.memory_space<vmem>>, %arg7: memref<2x1xf32, #tpu.memory_space<vmem>>, %arg8: memref<2x1024xf32, #tpu.memory_space<vmem>>) attributes {dimension_semantics = [#tpu.dimension_semantics<parallel>], iteration_bounds = array<i64: 1>, scalar_prefetch = 0 : i64, scratch_operands = 0 : i64, tpu.core_type = #tpu.core_type<tc>, window_params = [{transform_indices = @transform_0, window_bounds = array<i64: 4, 1024>}, {pipeline_mode = #tpu.pipeline_mode<synchronous>, transform_indices = @transform_1, window_bounds = array<i64: 128, 4>}, {pipeline_mode = #tpu.pipeline_mode<synchronous>, transform_indices = @transform_2, window_bounds = array<i64: 128, 1>}, {pipeline_mode = #tpu.pipeline_mode<synchronous>, transform_indices = @transform_3, window_bounds = array<i64: 128, 128>}, {pipeline_mode = #tpu.pipeline_mode<synchronous>, transform_indices = @transform_4, window_bounds = array<i64: 128, 1>}, {pipeline_mode = #tpu.pipeline_mode<synchronous>, transform_indices = @transform_5, window_bounds = array<i64: 2, 128>}, {pipeline_mode = #tpu.pipeline_mode<synchronous>, transform_indices = @transform_6, window_bounds = array<i64: 2, 1>}, {transform_indices = @transform_7, window_bounds = array<i64: 2, 1024>}]} {
    %c0 = arith.constant 0 : index
    %c0_0 = arith.constant 0 : index
    %0 = vector.load %arg2[%c0, %c0_0] : memref<128x4xf32, #tpu.memory_space<vmem>>, vector<128x4xf32>
    %c0_1 = arith.constant 0 : index
    %c0_2 = arith.constant 0 : index
    %1 = vector.load %arg1[%c0_1, %c0_2] : memref<4x1024xf32, #tpu.memory_space<vmem>>, vector<4x1024xf32>
    %cst = arith.constant dense<0.000000e+00> : vector<128x1024xf32>
    %2 = tpu.matmul %0, %1, %cst {dimension_numbers = #tpu.dot_dimension_numbers<[1], [0], [0], [1], [0, 0, 1, 1], [], []>} : vector<128x4xf32>, vector<4x1024xf32>, vector<128x1024xf32> -> vector<128x1024xf32>
    %c0_3 = arith.constant 0 : index
    %c0_4 = arith.constant 0 : index
    %3 = vector.load %arg3[%c0_3, %c0_4] : memref<128x1xf32, #tpu.memory_space<vmem>>, vector<128x1xf32>
    %4 = vector.broadcast %3 : vector<128x1xf32> to vector<128x1024xf32>
    %5 = arith.addf %2, %4 : vector<128x1024xf32>
    %cst_5 = arith.constant 0.000000e+00 : f32
    %6 = vector.broadcast %cst_5 : f32 to vector<128x1024xf32>
    %7 = arith.maximumf %5, %6 : vector<128x1024xf32>
    %c0_6 = arith.constant 0 : index
    %c0_7 = arith.constant 0 : index
    %8 = vector.load %arg4[%c0_6, %c0_7] : memref<128x128xf32, #tpu.memory_space<vmem>>, vector<128x128xf32>
    %cst_8 = arith.constant dense<0.000000e+00> : vector<128x1024xf32>
    %9 = tpu.matmul %8, %7, %cst_8 {dimension_numbers = #tpu.dot_dimension_numbers<[1], [0], [0], [1], [0, 0, 1, 1], [], []>} : vector<128x128xf32>, vector<128x1024xf32>, vector<128x1024xf32> -> vector<128x1024xf32>
    %c0_9 = arith.constant 0 : index
    %c0_10 = arith.constant 0 : index
    %10 = vector.load %arg5[%c0_9, %c0_10] : memref<128x1xf32, #tpu.memory_space<vmem>>, vector<128x1xf32>
    %11 = vector.broadcast %10 : vector<128x1xf32> to vector<128x1024xf32>
    %12 = arith.addf %9, %11 : vector<128x1024xf32>
    %cst_11 = arith.constant 0.000000e+00 : f32
    %13 = vector.broadcast %cst_11 : f32 to vector<128x1024xf32>
    %14 = arith.maximumf %12, %13 : vector<128x1024xf32>
    %c0_12 = arith.constant 0 : index
    %c0_13 = arith.constant 0 : index
    %15 = vector.load %arg6[%c0_12, %c0_13] : memref<2x128xf32, #tpu.memory_space<vmem>>, vector<2x128xf32>
    %cst_14 = arith.constant dense<0.000000e+00> : vector<2x1024xf32>
    %16 = tpu.matmul %15, %14, %cst_14 {dimension_numbers = #tpu.dot_dimension_numbers<[1], [0], [0], [1], [0, 0, 1, 1], [], []>} : vector<2x128xf32>, vector<128x1024xf32>, vector<2x1024xf32> -> vector<2x1024xf32>
    %c0_15 = arith.constant 0 : index
    %c0_16 = arith.constant 0 : index
    %17 = vector.load %arg7[%c0_15, %c0_16] : memref<2x1xf32, #tpu.memory_space<vmem>>, vector<2x1xf32>
    %18 = vector.broadcast %17 : vector<2x1xf32> to vector<2x1024xf32>
    %19 = arith.addf %16, %18 : vector<2x1024xf32>
    %cst_17 = arith.constant 0.000000e+00 : f32
    %20 = vector.broadcast %cst_17 : f32 to vector<2x1024xf32>
    %21 = arith.subf %20, %19 : vector<2x1024xf32>
    %22 = math.exp %21 : vector<2x1024xf32>
    %cst_18 = arith.constant 1.000000e+00 : f32
    %23 = vector.broadcast %cst_18 : f32 to vector<2x1024xf32>
    %24 = arith.addf %23, %22 : vector<2x1024xf32>
    %25 = tpu.reciprocal %24 : vector<2x1024xf32> -> vector<2x1024xf32>
    %c0_19 = arith.constant 0 : index
    %c0_20 = arith.constant 0 : index
    %26 = vector.load %arg8[%c0_19, %c0_20] : memref<2x1024xf32, #tpu.memory_space<vmem>>, vector<2x1024xf32>
    tpu.vector_store %arg8[%c0_19, %c0_20], %25 {strides = array<i32>} : memref<2x1024xf32, #tpu.memory_space<vmem>>, vector<2x1024xf32>,
    return
  }
  func.func @transform_0(%arg0: i32) -> (i32, i32) {
    %c0_i32 = arith.constant 0 : i32
    %c0_i32_0 = arith.constant 0 : i32
    return %c0_i32, %arg0 : i32, i32
  }
  func.func @transform_1(%arg0: i32) -> (i32, i32) {
    %c0_i32 = arith.constant 0 : i32
    %c0_i32_0 = arith.constant 0 : i32
    %c0_i32_1 = arith.constant 0 : i32
    return %c0_i32, %c0_i32_0 : i32, i32
  }
  func.func @transform_2(%arg0: i32) -> (i32, i32) {
    %c0_i32 = arith.constant 0 : i32
    %c0_i32_0 = arith.constant 0 : i32
    %c0_i32_1 = arith.constant 0 : i32
    return %c0_i32, %c0_i32_0 : i32, i32
  }
  func.func @transform_3(%arg0: i32) -> (i32, i32) {
    %c0_i32 = arith.constant 0 : i32
    %c0_i32_0 = arith.constant 0 : i32
    %c0_i32_1 = arith.constant 0 : i32
    return %c0_i32, %c0_i32_0 : i32, i32
  }
  func.func @transform_4(%arg0: i32) -> (i32, i32) {
    %c0_i32 = arith.constant 0 : i32
    %c0_i32_0 = arith.constant 0 : i32
    %c0_i32_1 = arith.constant 0 : i32
    return %c0_i32, %c0_i32_0 : i32, i32
  }
  func.func @transform_5(%arg0: i32) -> (i32, i32) {
    %c0_i32 = arith.constant 0 : i32
    %c0_i32_0 = arith.constant 0 : i32
    %c0_i32_1 = arith.constant 0 : i32
    return %c0_i32, %c0_i32_0 : i32, i32
  }
  func.func @transform_6(%arg0: i32) -> (i32, i32) {
    %c0_i32 = arith.constant 0 : i32
    %c0_i32_0 = arith.constant 0 : i32
    %c0_i32_1 = arith.constant 0 : i32
    return %c0_i32, %c0_i32_0 : i32, i32
  }
  func.func @transform_7(%arg0: i32) -> (i32, i32) {
    %c0_i32 = arith.constant 0 : i32
    %c0_i32_0 = arith.constant 0 : i32
    return %c0_i32, %arg0 : i32, i32
  }
}

</mosaic_0001>

<llo_original>
// kernel: actor_forward.1
$region0: #{actor_forward.1}
  #allocation0 [shape = 'u32[]', space=smem, size = 0x4, offset = 0x4, fixed_abs, tag = 'smem constant byte address 0x4 - core index']
  #allocation1 [shape = 'u32[144,128]{1,0:T(1,128)}', space=vmem, size = 0x12000, scoped, tag = 'internal scratch']
  %s0 = inlined_call_operand.vmem [shape: f32[4,1024], index: 0, kind: input, shape index: {}]
  %s1 = inlined_call_operand.vmem [shape: f32[128,4], index: 1, kind: input, shape index: {}]
  %s2 = inlined_call_operand.vmem [shape: f32[128,1], index: 2, kind: input, shape index: {}]
  %s3 = inlined_call_operand.vmem [shape: f32[128,128], index: 3, kind: input, shape index: {}]
  %s4 = inlined_call_operand.vmem [shape: f32[128,1], index: 4, kind: input, shape index: {}]
  %s5 = inlined_call_operand.vmem [shape: f32[2,128], index: 5, kind: input, shape index: {}]
  %s6 = inlined_call_operand.vmem [shape: f32[2,1], index: 6, kind: input, shape index: {}]
  %s7 = inlined_call_operand.hbm [shape: f32[2,1024], index: 7, kind: output, shape index: {}]
  %s8 = sld [smem:[#allocation0]]
  $region38: #{actor_forward.1} parent=0
    _
  %s10 = ssub.s32 1, %s8
  %s11 = scalar_select 0, %s10, %s8
  $region1: #{actor_forward.1} parent=0
    #allocation2 [shape = 'u8[8192]{0}', space=vmem, size = 0x2000, scoped, tag = 'output window, operand 0, single buffered']
    #allocation3 [shape = 's32[1]{0}', space=sflag, size = 0x4, scoped, tag = 'scoped memory for actor_forward.1']
    %12 = vsyncpa [#allocation3], 0
    // Predicated region
    $region2: #{actor_forward.1} parent=1 // pred_check
      _
    $region3: #{actor_forward.1} parent=1 // pred_check_branch
      %14 = sbr.rel (0) target = $region5
    $region4: #{actor_forward.1} parent=1 // pred_region
      _
    $region5: #{actor_forward.1} parent=1 // pred_fallthru
      _
    // Predicated region
    $region6: #{actor_forward.1} parent=1 // pred_check
      _
    $region7: #{actor_forward.1} parent=1 // pred_check_branch
      %16 = sbr.rel (0) target = $region9
    $region8: #{actor_forward.1} parent=1 // pred_region
      _
    $region9: #{actor_forward.1} parent=1 // pred_fallthru
      _
    // Predicated region
    $region10: #{actor_forward.1} parent=1 // pred_check
      _
    $region11: #{actor_forward.1} parent=1 // pred_check_branch
      %18 = sbr.rel (0) target = $region13
    $region12: #{actor_forward.1} parent=1 // pred_region
      _
    $region13: #{actor_forward.1} parent=1 // pred_fallthru
      _
    // Predicated region
    $region14: #{actor_forward.1} parent=1 // pred_check
      _
    $region15: #{actor_forward.1} parent=1 // pred_check_branch
      %20 = sbr.rel (0) target = $region17
    $region16: #{actor_forward.1} parent=1 // pred_region
      _
    $region17: #{actor_forward.1} parent=1 // pred_fallthru
      _
    // Predicated region
    $region18: #{actor_forward.1} parent=1 // pred_check
      _
    $region19: #{actor_forward.1} parent=1 // pred_check_branch
      %22 = sbr.rel (0) target = $region21
    $region20: #{actor_forward.1} parent=1 // pred_region
      _
    $region21: #{actor_forward.1} parent=1 // pred_fallthru
      _
    // Predicated region
    $region22: #{actor_forward.1} parent=1 // pred_check
      _
    $region23: #{actor_forward.1} parent=1 // pred_check_branch
      %24 = sbr.rel (0) target = $region25
    $region24: #{actor_forward.1} parent=1 // pred_region
      _
    $region25: #{actor_forward.1} parent=1 // pred_fallthru
      _
    // Predicated region
    $region26: #{actor_forward.1} parent=1 // pred_check
      _
    $region27: #{actor_forward.1} parent=1 // pred_check_branch
      %26 = sbr.rel (0) target = $region29
    $region28: #{actor_forward.1} parent=1 // pred_region
      _
    $region29: #{actor_forward.1} parent=1 // pred_fallthru
      _
    %v27 = vld [vmem:[%s1] sm:$0xff]
    %v28 = vld [vmem:[%s1 + $0x8] sm:$0xff]
    %v29 = vld [vmem:[%s1 + $0x10] sm:$0xff]
    %v30 = vld [vmem:[%s1 + $0x18] sm:$0xff]
    %v31 = vld [vmem:[%s1 + $0x20] sm:$0xff]
    %v32 = vld [vmem:[%s1 + $0x28] sm:$0xff]
    %v33 = vld [vmem:[%s1 + $0x30] sm:$0xff]
    %v34 = vld [vmem:[%s1 + $0x38] sm:$0xff]
    %v35 = vld [vmem:[%s1 + $0x40] sm:$0xff]
    %v36 = vld [vmem:[%s1 + $0x48] sm:$0xff]
    %v37 = vld [vmem:[%s1 + $0x50] sm:$0xff]
    %v38 = vld [vmem:[%s1 + $0x58] sm:$0xff]
    %v39 = vld [vmem:[%s1 + $0x60] sm:$0xff]
    %v40 = vld [vmem:[%s1 + $0x68] sm:$0xff]
    %v41 = vld [vmem:[%s1 + $0x70] sm:$0xff]
    %v42 = vld [vmem:[%s1 + $0x78] sm:$0xff]
    %v43 = vld [vmem:[%s0] sm:$0xff]
    %v44 = vld [vmem:[%s0 + $0x8] sm:$0xff]
    %v45 = vld [vmem:[%s0 + $0x10] sm:$0xff]
    %v46 = vld [vmem:[%s0 + $0x18] sm:$0xff]
    %v47 = vld [vmem:[%s2] sm:$0xff]
    %v48 = vld [vmem:[%s2 + $0x8] sm:$0xff]
    %v49 = vld [vmem:[%s2 + $0x10] sm:$0xff]
    %v50 = vld [vmem:[%s2 + $0x18] sm:$0xff]
    %v51 = vld [vmem:[%s2 + $0x20] sm:$0xff]
    %v52 = vld [vmem:[%s2 + $0x28] sm:$0xff]
    %v53 = vld [vmem:[%s2 + $0x30] sm:$0xff]
    %v54 = vld [vmem:[%s2 + $0x38] sm:$0xff]
    %v55 = vld [vmem:[%s2 + $0x40] sm:$0xff]
    %v56 = vld [vmem:[%s2 + $0x48] sm:$0xff]
    %v57 = vld [vmem:[%s2 + $0x50] sm:$0xff]
    %v58 = vld [vmem:[%s2 + $0x58] sm:$0xff]
    %v59 = vld [vmem:[%s2 + $0x60] sm:$0xff]
    %v60 = vld [vmem:[%s2 + $0x68] sm:$0xff]
    %v61 = vld [vmem:[%s2 + $0x70] sm:$0xff]
    %v62 = vld [vmem:[%s2 + $0x78] sm:$0xff]
    %64 = vset.pattern.permute.xlu0 0
    %65 = vperm.xlu0 %64, %v47
    %v66 = vpop.permute.xlu0 %65
    %69 = vset.pattern.permute.xlu0 0
    %70 = vperm.xlu0 %69, %v48
    %v71 = vpop.permute.xlu0 %70
    %74 = vset.pattern.permute.xlu0 0
    %75 = vperm.xlu0 %74, %v49
    %v76 = vpop.permute.xlu0 %75
    %79 = vset.pattern.permute.xlu0 0
    %80 = vperm.xlu0 %79, %v50
    %v81 = vpop.permute.xlu0 %80
    %84 = vset.pattern.permute.xlu0 0
    %85 = vperm.xlu0 %84, %v51
    %v86 = vpop.permute.xlu0 %85
    %89 = vset.pattern.permute.xlu0 0
    %90 = vperm.xlu0 %89, %v52
    %v91 = vpop.permute.xlu0 %90
    %94 = vset.pattern.permute.xlu0 0
    %95 = vperm.xlu0 %94, %v53
    %v96 = vpop.permute.xlu0 %95
    %99 = vset.pattern.permute.xlu0 0
    %100 = vperm.xlu0 %99, %v54
    %v101 = vpop.permute.xlu0 %100
    %104 = vset.pattern.permute.xlu0 0
    %105 = vperm.xlu0 %104, %v55
    %v106 = vpop.permute.xlu0 %105
    %109 = vset.pattern.permute.xlu0 0
    %110 = vperm.xlu0 %109, %v56
    %v111 = vpop.permute.xlu0 %110
    %114 = vset.pattern.permute.xlu0 0
    %115 = vperm.xlu0 %114, %v57
    %v116 = vpop.permute.xlu0 %115
    %119 = vset.pattern.permute.xlu0 0
    %120 = vperm.xlu0 %119, %v58
    %v121 = vpop.permute.xlu0 %120
    %124 = vset.pattern.permute.xlu0 0
    %125 = vperm.xlu0 %124, %v59
    %v126 = vpop.permute.xlu0 %125
    %129 = vset.pattern.permute.xlu0 0
    %130 = vperm.xlu0 %129, %v60
    %v131 = vpop.permute.xlu0 %130
    %134 = vset.pattern.permute.xlu0 0
    %135 = vperm.xlu0 %134, %v61
    %v136 = vpop.permute.xlu0 %135
    %139 = vset.pattern.permute.xlu0 0
    %140 = vperm.xlu0 %139, %v62
    %v141 = vpop.permute.xlu0 %140
    %v147 = vcombine.high %v43, %v43
    %v148 = vcombine.high %v44, %v44
    %v149 = vcombine.high %v45, %v45
    %v150 = vcombine.high %v46, %v46
    %vm151 = vcmask 31744
    %v153 = vsel %vm151, %v27, 0
    %v156 = vsel %vm151, %v28, 0
    %v159 = vsel %vm151, %v29, 0
    %v162 = vsel %vm151, %v30, 0
    %v165 = vsel %vm151, %v31, 0
    %v168 = vsel %vm151, %v32, 0
    %v171 = vsel %vm151, %v33, 0
    %v174 = vsel %vm151, %v34, 0
    %v177 = vsel %vm151, %v35, 0
    %v180 = vsel %vm151, %v36, 0
    %v183 = vsel %vm151, %v37, 0
    %v186 = vsel %vm151, %v38, 0
    %v189 = vsel %vm151, %v39, 0
    %v192 = vsel %vm151, %v40, 0
    %v195 = vsel %vm151, %v41, 0
    %v198 = vsel %vm151, %v42, 0
    %vm200 = vcmask 1043456
    %v201 = vsel %vm200, %v43, 0
    %v203 = vsel %vm200, %v147, 0
    %v205 = vsel %vm200, %v44, 0
    %v207 = vsel %vm200, %v148, 0
    %v209 = vsel %vm200, %v45, 0
    %v211 = vsel %vm200, %v149, 0
    %v213 = vsel %vm200, %v46, 0
    %v215 = vsel %vm200, %v150, 0
    %217 = vmatprep.subr.mxu0 %v203
    %218 = vmatpush1.msra.mxu0 %v201
    %219 = vmatprep.subr.mxu0 0.0
    %220 = vmatpush1.msra.mxu0 0.0
    %221 = vmatprep.subr.mxu0 0.0
    %222 = vmatpush1.msra.mxu0 0.0
    %223 = vmatprep.subr.mxu0 0.0
    %224 = vmatpush1.msra.mxu0 0.0
    %225 = vmatprep.subr.mxu0 0.0
    %226 = vmatpush1.msra.mxu0 0.0
    %227 = vmatprep.subr.mxu0 0.0
    %228 = vmatpush1.msra.mxu0 0.0
    %229 = vmatprep.subr.mxu0 0.0
    %230 = vmatpush1.msra.mxu0 0.0
    %231 = vmatprep.subr.mxu0 0.0
    %232 = vmatpush1.msra.mxu0 0.0
    %233 = vmatprep.subr.mxu0 0.0
    %234 = vmatpush1.msra.mxu0 0.0
    %235 = vmatprep.subr.mxu0 0.0
    %236 = vmatpush1.msra.mxu0 0.0
    %237 = vmatprep.subr.mxu0 0.0
    %238 = vmatpush1.msra.mxu0 0.0
    %239 = vmatprep.subr.mxu0 0.0
    %240 = vmatpush1.msra.mxu0 0.0
    %241 = vmatprep.subr.mxu0 0.0
    %242 = vmatpush1.msra.mxu0 0.0
    %243 = vmatprep.subr.mxu0 0.0
    %244 = vmatpush1.msra.mxu0 0.0
    %245 = vmatprep.subr.mxu0 0.0
    %246 = vmatpush1.msra.mxu0 0.0
    %247 = vmatprep.subr.mxu0 0.0
    %248 = vmatpush1.msra.mxu0 0.0
    %249 = vmatprep.subr.mxu0 0.0
    %250 = vmatpush1.msra.mxu0 0.0
    %251 = vmatprep.subr.mxu0 0.0
    %252 = vmatpush1.msra.mxu0 0.0
    %253 = vmatprep.subr.mxu0 0.0
    %254 = vmatpush1.msra.mxu0 0.0
    %255 = vmatprep.subr.mxu0 0.0
    %256 = vmatpush1.msra.mxu0 0.0
    %257 = vmatprep.subr.mxu0 0.0
    %258 = vmatpush1.msra.mxu0 0.0
    %259 = vmatprep.subr.mxu0 0.0
    %260 = vmatpush1.msra.mxu0 0.0
    %261 = vmatprep.subr.mxu0 0.0
    %262 = vmatpush1.msra.mxu0 0.0
    %263 = vmatprep.subr.mxu0 0.0
    %264 = vmatpush1.msra.mxu0 0.0
    %265 = vmatprep.subr.mxu0 0.0
    %266 = vmatpush1.msra.mxu0 0.0
    %267 = vmatprep.subr.mxu0 0.0
    %268 = vmatpush1.msra.mxu0 0.0
    %269 = vmatprep.subr.mxu0 0.0
    %270 = vmatpush1.msra.mxu0 0.0
    %271 = vmatprep.subr.mxu0 0.0
    %272 = vmatpush1.msra.mxu0 0.0
    %273 = vmatprep.subr.mxu0 0.0
    %274 = vmatpush1.msra.mxu0 0.0
    %275 = vmatprep.subr.mxu0 0.0
    %276 = vmatpush1.msra.mxu0 0.0
    %277 = vmatprep.subr.mxu0 0.0
    %278 = vmatpush1.msra.mxu0 0.0
    %279 = vmatprep.subr.mxu0 0.0
    %280 = vmatpush1.msra.mxu0 0.0
    %281 = vmatprep.mubr.f32.mxu0 0.0
    %282 = vmatmul.mubr.f32.gmra.mrb[0].mxu0 %v153
    %v283 = vpop.f32.mrb[0].mxu0
    %v284 = vadd.f32 %v66, %v283
    %v285 = vpop.f32.mrb[0].mxu0
    %v286 = vadd.f32 %v66, %v285
    %287 = vmatprep.mubr.f32.mxu0 0.0
    %288 = vmatmul.mubr.f32.gmra.mrb[0].mxu0 %v156
    %v289 = vpop.f32.mrb[0].mxu0
    %v290 = vadd.f32 %v71, %v289
    %v291 = vpop.f32.mrb[0].mxu0
    %v292 = vadd.f32 %v71, %v291
    %293 = vmatprep.mubr.f32.mxu0 0.0
    %294 = vmatmul.mubr.f32.gmra.mrb[0].mxu0 %v159
    %v295 = vpop.f32.mrb[0].mxu0
    %v296 = vadd.f32 %v76, %v295
    %v297 = vpop.f32.mrb[0].mxu0
    %v298 = vadd.f32 %v76, %v297
    %299 = vmatprep.mubr.f32.mxu0 0.0
    %300 = vmatmul.mubr.f32.gmra.mrb[0].mxu0 %v162
    %v301 = vpop.f32.mrb[0].mxu0
    %v302 = vadd.f32 %v81, %v301
    %v303 = vpop.f32.mrb[0].mxu0
    %v304 = vadd.f32 %v81, %v303
    %305 = vmatprep.mubr.f32.mxu0 0.0
    %306 = vmatmul.mubr.f32.gmra.mrb[0].mxu0 %v165
    %v307 = vpop.f32.mrb[0].mxu0
    %v308 = vadd.f32 %v86, %v307
    %v309 = vpop.f32.mrb[0].mxu0
    %v310 = vadd.f32 %v86, %v309
    %311 = vmatprep.mubr.f32.mxu0 0.0
    %312 = vmatmul.mubr.f32.gmra.mrb[0].mxu0 %v168
    %v313 = vpop.f32.mrb[0].mxu0
    %v314 = vadd.f32 %v91, %v313
    %v315 = vpop.f32.mrb[0].mxu0
    %v316 = vadd.f32 %v91, %v315
    %317 = vmatprep.mubr.f32.mxu0 0.0
    %318 = vmatmul.mubr.f32.gmra.mrb[0].mxu0 %v171
    %v319 = vpop.f32.mrb[0].mxu0
    %v320 = vadd.f32 %v96, %v319
    %v321 = vpop.f32.mrb[0].mxu0
    %v322 = vadd.f32 %v96, %v321
    %323 = vmatprep.mubr.f32.mxu0 0.0
    %324 = vmatmul.mubr.f32.gmra.mrb[0].mxu0 %v174
    %v325 = vpop.f32.mrb[0].mxu0
    %v326 = vadd.f32 %v101, %v325
    %v327 = vpop.f32.mrb[0].mxu0
    %v328 = vadd.f32 %v101, %v327
    %329 = vmatprep.mubr.f32.mxu0 0.0
    %330 = vmatmul.mubr.f32.gmra.mrb[0].mxu0 %v177
    %v331 = vpop.f32.mrb[0].mxu0
    %v332 = vadd.f32 %v106, %v331
    %v333 = vpop.f32.mrb[0].mxu0
    %v334 = vadd.f32 %v106, %v333
    %335 = vmatprep.mubr.f32.mxu0 0.0
    %336 = vmatmul.mubr.f32.gmra.mrb[0].mxu0 %v180
    %v337 = vpop.f32.mrb[0].mxu0
    %v338 = vadd.f32 %v111, %v337
    %v339 = vpop.f32.mrb[0].mxu0
    %v340 = vadd.f32 %v111, %v339
    %341 = vmatprep.mubr.f32.mxu0 0.0
    %342 = vmatmul.mubr.f32.gmra.mrb[0].mxu0 %v183
    %v343 = vpop.f32.mrb[0].mxu0
    %v344 = vadd.f32 %v116, %v343
    %v345 = vpop.f32.mrb[0].mxu0
    %v346 = vadd.f32 %v116, %v345
    %347 = vmatprep.mubr.f32.mxu0 0.0
    %348 = vmatmul.mubr.f32.gmra.mrb[0].mxu0 %v186
    %v349 = vpop.f32.mrb[0].mxu0
    %v350 = vadd.f32 %v121, %v349
    %v351 = vpop.f32.mrb[0].mxu0
    %v352 = vadd.f32 %v121, %v351
    %353 = vmatprep.mubr.f32.mxu0 0.0
    %354 = vmatmul.mubr.f32.gmra.mrb[0].mxu0 %v189
    %v355 = vpop.f32.mrb[0].mxu0
    %v356 = vadd.f32 %v126, %v355
    %v357 = vpop.f32.mrb[0].mxu0
    %v358 = vadd.f32 %v126, %v357
    %359 = vmatprep.mubr.f32.mxu0 0.0
    %360 = vmatmul.mubr.f32.gmra.mrb[0].mxu0 %v192
    %v361 = vpop.f32.mrb[0].mxu0
    %v362 = vadd.f32 %v131, %v361
    %v363 = vpop.f32.mrb[0].mxu0
    %v364 = vadd.f32 %v131, %v363
    %365 = vmatprep.mubr.f32.mxu0 0.0
    %366 = vmatmul.mubr.f32.gmra.mrb[0].mxu0 %v195
    %v367 = vpop.f32.mrb[0].mxu0
    %v368 = vadd.f32 %v136, %v367
    %v369 = vpop.f32.mrb[0].mxu0
    %v370 = vadd.f32 %v136, %v369
    %371 = vmatprep.mubr.f32.mxu0 0.0
    %372 = vmatmul.mubr.f32.gmra.mrb[0].mxu0 %v198
    %v373 = vpop.f32.mrb[0].mxu0
    %v374 = vadd.f32 %v141, %v373
    %v375 = vpop.f32.mrb[0].mxu0
    %v376 = vadd.f32 %v141, %v375
    %377 = vdwg.mxu0
    %378 = vmatprep.subr.mxu0 %v207
    %379 = vmatpush1.msra.mxu0 %v205
    %380 = vmatprep.subr.mxu0 0.0
    %381 = vmatpush1.msra.mxu0 0.0
    %382 = vmatprep.subr.mxu0 0.0
    %383 = vmatpush1.msra.mxu0 0.0
    %384 = vmatprep.subr.mxu0 0.0
    %385 = vmatpush1.msra.mxu0 0.0
    %386 = vmatprep.subr.mxu0 0.0
    %387 = vmatpush1.msra.mxu0 0.0
    %388 = vmatprep.subr.mxu0 0.0
    %389 = vmatpush1.msra.mxu0 0.0
    %390 = vmatprep.subr.mxu0 0.0
    %391 = vmatpush1.msra.mxu0 0.0
    %392 = vmatprep.subr.mxu0 0.0
    %393 = vmatpush1.msra.mxu0 0.0
    %394 = vmatprep.subr.mxu0 0.0
    %395 = vmatpush1.msra.mxu0 0.0
    %396 = vmatprep.subr.mxu0 0.0
    %397 = vmatpush1.msra.mxu0 0.0
    %398 = vmatprep.subr.mxu0 0.0
    %399 = vmatpush1.msra.mxu0 0.0
    %400 = vmatprep.subr.mxu0 0.0
    %401 = vmatpush1.msra.mxu0 0.0
    %402 = vmatprep.subr.mxu0 0.0
    %403 = vmatpush1.msra.mxu0 0.0
    %404 = vmatprep.subr.mxu0 0.0
    %405 = vmatpush1.msra.mxu0 0.0
    %406 = vmatprep.subr.mxu0 0.0
    %407 = vmatpush1.msra.mxu0 0.0
    %408 = vmatprep.subr.mxu0 0.0
    %409 = vmatpush1.msra.mxu0 0.0
    %410 = vmatprep.subr.mxu0 0.0
    %411 = vmatpush1.msra.mxu0 0.0
    %412 = vmatprep.subr.mxu0 0.0
    %413 = vmatpush1.msra.mxu0 0.0
    %414 = vmatprep.subr.mxu0 0.0
    %415 = vmatpush1.msra.mxu0 0.0
    %416 = vmatprep.subr.mxu0 0.0
    %417 = vmatpush1.msra.mxu0 0.0
    %418 = vmatprep.subr.mxu0 0.0
    %419 = vmatpush1.msra.mxu0 0.0
    %420 = vmatprep.subr.mxu0 0.0
    %421 = vmatpush1.msra.mxu0 0.0
    %422 = vmatprep.subr.mxu0 0.0
    %423 = vmatpush1.msra.mxu0 0.0
    %424 = vmatprep.subr.mxu0 0.0
    %425 = vmatpush1.msra.mxu0 0.0
    %426 = vmatprep.subr.mxu0 0.0
    %427 = vmatpush1.msra.mxu0 0.0
    %428 = vmatprep.subr.mxu0 0.0
    %429 = vmatpush1.msra.mxu0 0.0
    %430 = vmatprep.subr.mxu0 0.0
    %431 = vmatpush1.msra.mxu0 0.0
    %432 = vmatprep.subr.mxu0 0.0
    %433 = vmatpush1.msra.mxu0 0.0
    %434 = vmatprep.subr.mxu0 0.0
    %435 = vmatpush1.msra.mxu0 0.0
    %436 = vmatprep.subr.mxu0 0.0
    %437 = vmatpush1.msra.mxu0 0.0
    %438 = vmatprep.subr.mxu0 0.0
    %439 = vmatpush1.msra.mxu0 0.0
    %440 = vmatprep.subr.mxu0 0.0
    %441 = vmatpush1.msra.mxu0 0.0
    %442 = vmatprep.mubr.f32.mxu0 0.0
    %443 = vmatmul.mubr.f32.gmra.mrb[0].mxu0 %v153
    %v444 = vpop.f32.mrb[0].mxu0
    %v445 = vadd.f32 %v66, %v444
    %v446 = vpop.f32.mrb[0].mxu0
    %v447 = vadd.f32 %v66, %v446
    %448 = vmatprep.mubr.f32.mxu0 0.0
    %449 = vmatmul.mubr.f32.gmra.mrb[0].mxu0 %v156
    %v450 = vpop.f32.mrb[0].mxu0
    %v451 = vadd.f32 %v71, %v450
    %v452 = vpop.f32.mrb[0].mxu0
    %v453 = vadd.f32 %v71, %v452
    %454 = vmatprep.mubr.f32.mxu0 0.0
    %455 = vmatmul.mubr.f32.gmra.mrb[0].mxu0 %v159
    %v456 = vpop.f32.mrb[0].mxu0
    %v457 = vadd.f32 %v76, %v456
    %v458 = vpop.f32.mrb[0].mxu0
    %v459 = vadd.f32 %v76, %v458
    %460 = vmatprep.mubr.f32.mxu0 0.0
    %461 = vmatmul.mubr.f32.gmra.mrb[0].mxu0 %v162
    %v462 = vpop.f32.mrb[0].mxu0
    %v463 = vadd.f32 %v81, %v462
    %v464 = vpop.f32.mrb[0].mxu0
    %v465 = vadd.f32 %v81, %v464
    %466 = vmatprep.mubr.f32.mxu0 0.0
    %467 = vmatmul.mubr.f32.gmra.mrb[0].mxu0 %v165
    %v468 = vpop.f32.mrb[0].mxu0
    %v469 = vadd.f32 %v86, %v468
    %v470 = vpop.f32.mrb[0].mxu0
    %v471 = vadd.f32 %v86, %v470
    %472 = vmatprep.mubr.f32.mxu0 0.0
    %473 = vmatmul.mubr.f32.gmra.mrb[0].mxu0 %v168
    %v474 = vpop.f32.mrb[0].mxu0
    %v475 = vadd.f32 %v91, %v474
    %v476 = vpop.f32.mrb[0].mxu0
    %v477 = vadd.f32 %v91, %v476
    %478 = vmatprep.mubr.f32.mxu0 0.0
    %479 = vmatmul.mubr.f32.gmra.mrb[0].mxu0 %v171
    %v480 = vpop.f32.mrb[0].mxu0
    %v481 = vadd.f32 %v96, %v480
    %v482 = vpop.f32.mrb[0].mxu0
    %v483 = vadd.f32 %v96, %v482
    %484 = vmatprep.mubr.f32.mxu0 0.0
    %485 = vmatmul.mubr.f32.gmra.mrb[0].mxu0 %v174
    %v486 = vpop.f32.mrb[0].mxu0
    %v487 = vadd.f32 %v101, %v486
    %v488 = vpop.f32.mrb[0].mxu0
    %v489 = vadd.f32 %v101, %v488
    %490 = vmatprep.mubr.f32.mxu0 0.0
    %491 = vmatmul.mubr.f32.gmra.mrb[0].mxu0 %v177
    %v492 = vpop.f32.mrb[0].mxu0
    %v493 = vadd.f32 %v106, %v492
    %v494 = vpop.f32.mrb[0].mxu0
    %v495 = vadd.f32 %v106, %v494
    %496 = vmatprep.mubr.f32.mxu0 0.0
    %497 = vmatmul.mubr.f32.gmra.mrb[0].mxu0 %v180
    %v498 = vpop.f32.mrb[0].mxu0
    %v499 = vadd.f32 %v111, %v498
    %v500 = vpop.f32.mrb[0].mxu0
    %v501 = vadd.f32 %v111, %v500
    %502 = vmatprep.mubr.f32.mxu0 0.0
    %503 = vmatmul.mubr.f32.gmra.mrb[0].mxu0 %v183
    %v504 = vpop.f32.mrb[0].mxu0
    %v505 = vadd.f32 %v116, %v504
    %v506 = vpop.f32.mrb[0].mxu0
    %v507 = vadd.f32 %v116, %v506
    %508 = vmatprep.mubr.f32.mxu0 0.0
    %509 = vmatmul.mubr.f32.gmra.mrb[0].mxu0 %v186
    %v510 = vpop.f32.mrb[0].mxu0
    %v511 = vadd.f32 %v121, %v510
    %v512 = vpop.f32.mrb[0].mxu0
    %v513 = vadd.f32 %v121, %v512
    %514 = vmatprep.mubr.f32.mxu0 0.0
    %515 = vmatmul.mubr.f32.gmra.mrb[0].mxu0 %v189
    %v516 = vpop.f32.mrb[0].mxu0
    %v517 = vadd.f32 %v126, %v516
    %v518 = vpop.f32.mrb[0].mxu0
    %v519 = vadd.f32 %v126, %v518
    %520 = vmatprep.mubr.f32.mxu0 0.0
    %521 = vmatmul.mubr.f32.gmra.mrb[0].mxu0 %v192
    %v522 = vpop.f32.mrb[0].mxu0
    %v523 = vadd.f32 %v131, %v522
    %v524 = vpop.f32.mrb[0].mxu0
    %v525 = vadd.f32 %v131, %v524
    %526 = vmatprep.mubr.f32.mxu0 0.0
    %527 = vmatmul.mubr.f32.gmra.mrb[0].mxu0 %v195
    %v528 = vpop.f32.mrb[0].mxu0
    %v529 = vadd.f32 %v136, %v528
    %v530 = vpop.f32.mrb[0].mxu0
    %v531 = vadd.f32 %v136, %v530
    %532 = vmatprep.mubr.f32.mxu0 0.0
    %533 = vmatmul.mubr.f32.gmra.mrb[0].mxu0 %v198
    %v534 = vpop.f32.mrb[0].mxu0
    %v535 = vadd.f32 %v141, %v534
    %v536 = vpop.f32.mrb[0].mxu0
    %v537 = vadd.f32 %v141, %v536
    %538 = vdwg.mxu0
    %539 = vmatprep.subr.mxu0 %v211
    %540 = vmatpush1.msra.mxu0 %v209
    %541 = vmatprep.subr.mxu0 0.0
    %542 = vmatpush1.msra.mxu0 0.0
    %543 = vmatprep.subr.mxu0 0.0
    %544 = vmatpush1.msra.mxu0 0.0
    %545 = vmatprep.subr.mxu0 0.0
    %546 = vmatpush1.msra.mxu0 0.0
    %547 = vmatprep.subr.mxu0 0.0
    %548 = vmatpush1.msra.mxu0 0.0
    %549 = vmatprep.subr.mxu0 0.0
    %550 = vmatpush1.msra.mxu0 0.0
    %551 = vmatprep.subr.mxu0 0.0
    %552 = vmatpush1.msra.mxu0 0.0
    %553 = vmatprep.subr.mxu0 0.0
    %554 = vmatpush1.msra.mxu0 0.0
    %555 = vmatprep.subr.mxu0 0.0
    %556 = vmatpush1.msra.mxu0 0.0
    %557 = vmatprep.subr.mxu0 0.0
    %558 = vmatpush1.msra.mxu0 0.0
    %559 = vmatprep.subr.mxu0 0.0
    %560 = vmatpush1.msra.mxu0 0.0
    %561 = vmatprep.subr.mxu0 0.0
    %562 = vmatpush1.msra.mxu0 0.0
    %563 = vmatprep.subr.mxu0 0.0
    %564 = vmatpush1.msra.mxu0 0.0
    %565 = vmatprep.subr.mxu0 0.0
    %566 = vmatpush1.msra.mxu0 0.0
    %567 = vmatprep.subr.mxu0 0.0
    %568 = vmatpush1.msra.mxu0 0.0
    %569 = vmatprep.subr.mxu0 0.0
    %570 = vmatpush1.msra.mxu0 0.0
    %571 = vmatprep.subr.mxu0 0.0
    %572 = vmatpush1.msra.mxu0 0.0
    %573 = vmatprep.subr.mxu0 0.0
    %574 = vmatpush1.msra.mxu0 0.0
    %575 = vmatprep.subr.mxu0 0.0
    %576 = vmatpush1.msra.mxu0 0.0
    %577 = vmatprep.subr.mxu0 0.0
    %578 = vmatpush1.msra.mxu0 0.0
    %579 = vmatprep.subr.mxu0 0.0
    %580 = vmatpush1.msra.mxu0 0.0
    %581 = vmatprep.subr.mxu0 0.0
    %582 = vmatpush1.msra.mxu0 0.0
    %583 = vmatprep.subr.mxu0 0.0
    %584 = vmatpush1.msra.mxu0 0.0
    %585 = vmatprep.subr.mxu0 0.0
    %586 = vmatpush1.msra.mxu0 0.0
    %587 = vmatprep.subr.mxu0 0.0
    %588 = vmatpush1.msra.mxu0 0.0
    %589 = vmatprep.subr.mxu0 0.0
    %590 = vmatpush1.msra.mxu0 0.0
    %591 = vmatprep.subr.mxu0 0.0
    %592 = vmatpush1.msra.mxu0 0.0
    %593 = vmatprep.subr.mxu0 0.0
    %594 = vmatpush1.msra.mxu0 0.0
    %595 = vmatprep.subr.mxu0 0.0
    %596 = vmatpush1.msra.mxu0 0.0
    %597 = vmatprep.subr.mxu0 0.0
    %598 = vmatpush1.msra.mxu0 0.0
    %599 = vmatprep.subr.mxu0 0.0
    %600 = vmatpush1.msra.mxu0 0.0
    %601 = vmatprep.subr.mxu0 0.0
    %602 = vmatpush1.msra.mxu0 0.0
    %603 = vmatprep.mubr.f32.mxu0 0.0
    %604 = vmatmul.mubr.f32.gmra.mrb[0].mxu0 %v153
    %v605 = vpop.f32.mrb[0].mxu0
    %v606 = vadd.f32 %v66, %v605
    %v607 = vpop.f32.mrb[0].mxu0
    %v608 = vadd.f32 %v66, %v607
    %609 = vmatprep.mubr.f32.mxu0 0.0
    %610 = vmatmul.mubr.f32.gmra.mrb[0].mxu0 %v156
    %v611 = vpop.f32.mrb[0].mxu0
    %v612 = vadd.f32 %v71, %v611
    %v613 = vpop.f32.mrb[0].mxu0
    %v614 = vadd.f32 %v71, %v613
    %615 = vmatprep.mubr.f32.mxu0 0.0
    %616 = vmatmul.mubr.f32.gmra.mrb[0].mxu0 %v159
    %v617 = vpop.f32.mrb[0].mxu0
    %v618 = vadd.f32 %v76, %v617
    %v619 = vpop.f32.mrb[0].mxu0
    %v620 = vadd.f32 %v76, %v619
    %621 = vmatprep.mubr.f32.mxu0 0.0
    %622 = vmatmul.mubr.f32.gmra.mrb[0].mxu0 %v162
    %v623 = vpop.f32.mrb[0].mxu0
    %v624 = vadd.f32 %v81, %v623
    %v625 = vpop.f32.mrb[0].mxu0
    %v626 = vadd.f32 %v81, %v625
    %627 = vmatprep.mubr.f32.mxu0 0.0
    %628 = vmatmul.mubr.f32.gmra.mrb[0].mxu0 %v165
    %v629 = vpop.f32.mrb[0].mxu0
    %v630 = vadd.f32 %v86, %v629
    %v631 = vpop.f32.mrb[0].mxu0
    %v632 = vadd.f32 %v86, %v631
    %633 = vmatprep.mubr.f32.mxu0 0.0
    %634 = vmatmul.mubr.f32.gmra.mrb[0].mxu0 %v168
    %v635 = vpop.f32.mrb[0].mxu0
    %v636 = vadd.f32 %v91, %v635
    %v637 = vpop.f32.mrb[0].mxu0
    %v638 = vadd.f32 %v91, %v637
    %639 = vmatprep.mubr.f32.mxu0 0.0
    %640 = vmatmul.mubr.f32.gmra.mrb[0].mxu0 %v171
    %v641 = vpop.f32.mrb[0].mxu0
    %v642 = vadd.f32 %v96, %v641
    %v643 = vpop.f32.mrb[0].mxu0
    %v644 = vadd.f32 %v96, %v643
    %645 = vmatprep.mubr.f32.mxu0 0.0
    %646 = vmatmul.mubr.f32.gmra.mrb[0].mxu0 %v174
    %v647 = vpop.f32.mrb[0].mxu0
    %v648 = vadd.f32 %v101, %v647
    %v649 = vpop.f32.mrb[0].mxu0
    %v650 = vadd.f32 %v101, %v649
    %651 = vmatprep.mubr.f32.mxu0 0.0
    %652 = vmatmul.mubr.f32.gmra.mrb[0].mxu0 %v177
    %v653 = vpop.f32.mrb[0].mxu0
    %v654 = vadd.f32 %v106, %v653
    %v655 = vpop.f32.mrb[0].mxu0
    %v656 = vadd.f32 %v106, %v655
    %657 = vmatprep.mubr.f32.mxu0 0.0
    %658 = vmatmul.mubr.f32.gmra.mrb[0].mxu0 %v180
    %v659 = vpop.f32.mrb[0].mxu0
    %v660 = vadd.f32 %v111, %v659
    %v661 = vpop.f32.mrb[0].mxu0
    %v662 = vadd.f32 %v111, %v661
    %663 = vmatprep.mubr.f32.mxu0 0.0
    %664 = vmatmul.mubr.f32.gmra.mrb[0].mxu0 %v183
    %v665 = vpop.f32.mrb[0].mxu0
    %v666 = vadd.f32 %v116, %v665
    %v667 = vpop.f32.mrb[0].mxu0
    %v668 = vadd.f32 %v116, %v667
    %669 = vmatprep.mubr.f32.mxu0 0.0
    %670 = vmatmul.mubr.f32.gmra.mrb[0].mxu0 %v186
    %v671 = vpop.f32.mrb[0].mxu0
    %v672 = vadd.f32 %v121, %v671
    %v673 = vpop.f32.mrb[0].mxu0
    %v674 = vadd.f32 %v121, %v673
    %675 = vmatprep.mubr.f32.mxu0 0.0
    %676 = vmatmul.mubr.f32.gmra.mrb[0].mxu0 %v189
    %v677 = vpop.f32.mrb[0].mxu0
    %v678 = vadd.f32 %v126, %v677
    %v679 = vpop.f32.mrb[0].mxu0
    %v680 = vadd.f32 %v126, %v679
    %681 = vmatprep.mubr.f32.mxu0 0.0
    %682 = vmatmul.mubr.f32.gmra.mrb[0].mxu0 %v192
    %v683 = vpop.f32.mrb[0].mxu0
    %v684 = vadd.f32 %v131, %v683
    %v685 = vpop.f32.mrb[0].mxu0
    %v686 = vadd.f32 %v131, %v685
    %687 = vmatprep.mubr.f32.mxu0 0.0
    %688 = vmatmul.mubr.f32.gmra.mrb[0].mxu0 %v195
    %v689 = vpop.f32.mrb[0].mxu0
    %v690 = vadd.f32 %v136, %v689
    %v691 = vpop.f32.mrb[0].mxu0
    %v692 = vadd.f32 %v136, %v691
    %693 = vmatprep.mubr.f32.mxu0 0.0
    %694 = vmatmul.mubr.f32.gmra.mrb[0].mxu0 %v198
    %v695 = vpop.f32.mrb[0].mxu0
    %v696 = vadd.f32 %v141, %v695
    %v697 = vpop.f32.mrb[0].mxu0
    %v698 = vadd.f32 %v141, %v697
    %699 = vdwg.mxu0
    %700 = vmatprep.subr.mxu0 %v215
    %701 = vmatpush1.msra.mxu0 %v213
    %702 = vmatprep.subr.mxu0 0.0
    %703 = vmatpush1.msra.mxu0 0.0
    %704 = vmatprep.subr.mxu0 0.0
    %705 = vmatpush1.msra.mxu0 0.0
    %706 = vmatprep.subr.mxu0 0.0
    %707 = vmatpush1.msra.mxu0 0.0
    %708 = vmatprep.subr.mxu0 0.0
    %709 = vmatpush1.msra.mxu0 0.0
    %710 = vmatprep.subr.mxu0 0.0
    %711 = vmatpush1.msra.mxu0 0.0
    %712 = vmatprep.subr.mxu0 0.0
    %713 = vmatpush1.msra.mxu0 0.0
    %714 = vmatprep.subr.mxu0 0.0
    %715 = vmatpush1.msra.mxu0 0.0
    %716 = vmatprep.subr.mxu0 0.0
    %717 = vmatpush1.msra.mxu0 0.0
    %718 = vmatprep.subr.mxu0 0.0
    %719 = vmatpush1.msra.mxu0 0.0
    %720 = vmatprep.subr.mxu0 0.0
    %721 = vmatpush1.msra.mxu0 0.0
    %722 = vmatprep.subr.mxu0 0.0
    %723 = vmatpush1.msra.mxu0 0.0
    %724 = vmatprep.subr.mxu0 0.0
    %725 = vmatpush1.msra.mxu0 0.0
    %726 = vmatprep.subr.mxu0 0.0
    %727 = vmatpush1.msra.mxu0 0.0
    %728 = vmatprep.subr.mxu0 0.0
    %729 = vmatpush1.msra.mxu0 0.0
    %730 = vmatprep.subr.mxu0 0.0
    %731 = vmatpush1.msra.mxu0 0.0
    %732 = vmatprep.subr.mxu0 0.0
    %733 = vmatpush1.msra.mxu0 0.0
    %734 = vmatprep.subr.mxu0 0.0
    %735 = vmatpush1.msra.mxu0 0.0
    %736 = vmatprep.subr.mxu0 0.0
    %737 = vmatpush1.msra.mxu0 0.0
    %738 = vmatprep.subr.mxu0 0.0
    %739 = vmatpush1.msra.mxu0 0.0
    %740 = vmatprep.subr.mxu0 0.0
    %741 = vmatpush1.msra.mxu0 0.0
    %742 = vmatprep.subr.mxu0 0.0
    %743 = vmatpush1.msra.mxu0 0.0
    %744 = vmatprep.subr.mxu0 0.0
    %745 = vmatpush1.msra.mxu0 0.0
    %746 = vmatprep.subr.mxu0 0.0
    %747 = vmatpush1.msra.mxu0 0.0
    %748 = vmatprep.subr.mxu0 0.0
    %749 = vmatpush1.msra.mxu0 0.0
    %750 = vmatprep.subr.mxu0 0.0
    %751 = vmatpush1.msra.mxu0 0.0
    %752 = vmatprep.subr.mxu0 0.0
    %753 = vmatpush1.msra.mxu0 0.0
    %754 = vmatprep.subr.mxu0 0.0
    %755 = vmatpush1.msra.mxu0 0.0
    %756 = vmatprep.subr.mxu0 0.0
    %757 = vmatpush1.msra.mxu0 0.0
    %758 = vmatprep.subr.mxu0 0.0
    %759 = vmatpush1.msra.mxu0 0.0
    %760 = vmatprep.subr.mxu0 0.0
    %761 = vmatpush1.msra.mxu0 0.0
    %762 = vmatprep.subr.mxu0 0.0
    %763 = vmatpush1.msra.mxu0 0.0
    %764 = vmatprep.mubr.f32.mxu0 0.0
    %765 = vmatmul.mubr.f32.gmra.mrb[0].mxu0 %v153
    %v766 = vpop.f32.mrb[0].mxu0
    %v767 = vadd.f32 %v66, %v766
    %v768 = vpop.f32.mrb[0].mxu0
    %v769 = vadd.f32 %v66, %v768
    %770 = vmatprep.mubr.f32.mxu0 0.0
    %771 = vmatmul.mubr.f32.gmra.mrb[0].mxu0 %v156
    %v772 = vpop.f32.mrb[0].mxu0
    %v773 = vadd.f32 %v71, %v772
    %v774 = vpop.f32.mrb[0].mxu0
    %v775 = vadd.f32 %v71, %v774
    %776 = vmatprep.mubr.f32.mxu0 0.0
    %777 = vmatmul.mubr.f32.gmra.mrb[0].mxu0 %v159
    %v778 = vpop.f32.mrb[0].mxu0
    %v779 = vadd.f32 %v76, %v778
    %v780 = vpop.f32.mrb[0].mxu0
    %v781 = vadd.f32 %v76, %v780
    %782 = vmatprep.mubr.f32.mxu0 0.0
    %783 = vmatmul.mubr.f32.gmra.mrb[0].mxu0 %v162
    %v784 = vpop.f32.mrb[0].mxu0
    %v785 = vadd.f32 %v81, %v784
    %v786 = vpop.f32.mrb[0].mxu0
    %v787 = vadd.f32 %v81, %v786
    %788 = vmatprep.mubr.f32.mxu0 0.0
    %789 = vmatmul.mubr.f32.gmra.mrb[0].mxu0 %v165
    %v790 = vpop.f32.mrb[0].mxu0
    %v791 = vadd.f32 %v86, %v790
    %v792 = vpop.f32.mrb[0].mxu0
    %v793 = vadd.f32 %v86, %v792
    %794 = vmatprep.mubr.f32.mxu0 0.0
    %795 = vmatmul.mubr.f32.gmra.mrb[0].mxu0 %v168
    %v796 = vpop.f32.mrb[0].mxu0
    %v797 = vadd.f32 %v91, %v796
    %v798 = vpop.f32.mrb[0].mxu0
    %v799 = vadd.f32 %v91, %v798
    %800 = vmatprep.mubr.f32.mxu0 0.0
    %801 = vmatmul.mubr.f32.gmra.mrb[0].mxu0 %v171
    %v802 = vpop.f32.mrb[0].mxu0
    %v803 = vadd.f32 %v96, %v802
    %v804 = vpop.f32.mrb[0].mxu0
    %v805 = vadd.f32 %v96, %v804
    %806 = vmatprep.mubr.f32.mxu0 0.0
    %807 = vmatmul.mubr.f32.gmra.mrb[0].mxu0 %v174
    %v808 = vpop.f32.mrb[0].mxu0
    %v809 = vadd.f32 %v101, %v808
    %v810 = vpop.f32.mrb[0].mxu0
    %v811 = vadd.f32 %v101, %v810
    %812 = vmatprep.mubr.f32.mxu0 0.0
    %813 = vmatmul.mubr.f32.gmra.mrb[0].mxu0 %v177
    %v814 = vpop.f32.mrb[0].mxu0
    %v815 = vadd.f32 %v106, %v814
    %v816 = vpop.f32.mrb[0].mxu0
    %v817 = vadd.f32 %v106, %v816
    %818 = vmatprep.mubr.f32.mxu0 0.0
    %819 = vmatmul.mubr.f32.gmra.mrb[0].mxu0 %v180
    %v820 = vpop.f32.mrb[0].mxu0
    %v821 = vadd.f32 %v111, %v820
    %v822 = vpop.f32.mrb[0].mxu0
    %v823 = vadd.f32 %v111, %v822
    %824 = vmatprep.mubr.f32.mxu0 0.0
    %825 = vmatmul.mubr.f32.gmra.mrb[0].mxu0 %v183
    %v826 = vpop.f32.mrb[0].mxu0
    %v827 = vadd.f32 %v116, %v826
    %v828 = vpop.f32.mrb[0].mxu0
    %v829 = vadd.f32 %v116, %v828
    %830 = vmatprep.mubr.f32.mxu0 0.0
    %831 = vmatmul.mubr.f32.gmra.mrb[0].mxu0 %v186
    %v832 = vpop.f32.mrb[0].mxu0
    %v833 = vadd.f32 %v121, %v832
    %v834 = vpop.f32.mrb[0].mxu0
    %v835 = vadd.f32 %v121, %v834
    %836 = vmatprep.mubr.f32.mxu0 0.0
    %837 = vmatmul.mubr.f32.gmra.mrb[0].mxu0 %v189
    %v838 = vpop.f32.mrb[0].mxu0
    %v839 = vadd.f32 %v126, %v838
    %v840 = vpop.f32.mrb[0].mxu0
    %v841 = vadd.f32 %v126, %v840
    %842 = vmatprep.mubr.f32.mxu0 0.0
    %843 = vmatmul.mubr.f32.gmra.mrb[0].mxu0 %v192
    %v844 = vpop.f32.mrb[0].mxu0
    %v845 = vadd.f32 %v131, %v844
    %v846 = vpop.f32.mrb[0].mxu0
    %v847 = vadd.f32 %v131, %v846
    %848 = vmatprep.mubr.f32.mxu0 0.0
    %849 = vmatmul.mubr.f32.gmra.mrb[0].mxu0 %v195
    %v850 = vpop.f32.mrb[0].mxu0
    %v851 = vadd.f32 %v136, %v850
    %v852 = vpop.f32.mrb[0].mxu0
    %v853 = vadd.f32 %v136, %v852
    %854 = vmatprep.mubr.f32.mxu0 0.0
    %855 = vmatmul.mubr.f32.gmra.mrb[0].mxu0 %v198
    %v856 = vpop.f32.mrb[0].mxu0
    %v857 = vadd.f32 %v141, %v856
    %v858 = vpop.f32.mrb[0].mxu0
    %v859 = vadd.f32 %v141, %v858
    %860 = vdwg.mxu0
    %v861 = vmax.f32 %v284, 0.0
    %v862 = vmax.f32 %v286, 0.0
    %v863 = vmax.f32 %v445, 0.0
    %v864 = vmax.f32 %v447, 0.0
    %v865 = vmax.f32 %v606, 0.0
    %v866 = vmax.f32 %v608, 0.0
    %v867 = vmax.f32 %v767, 0.0
    %v868 = vmax.f32 %v769, 0.0
    %v869 = vmax.f32 %v290, 0.0
    %v870 = vmax.f32 %v292, 0.0
    %v871 = vmax.f32 %v451, 0.0
    %v872 = vmax.f32 %v453, 0.0
    %v873 = vmax.f32 %v612, 0.0
    %v874 = vmax.f32 %v614, 0.0
    %v875 = vmax.f32 %v773, 0.0
    %v876 = vmax.f32 %v775, 0.0
    %v877 = vmax.f32 %v296, 0.0
    %v878 = vmax.f32 %v298, 0.0
    %v879 = vmax.f32 %v457, 0.0
    %v880 = vmax.f32 %v459, 0.0
    %v881 = vmax.f32 %v618, 0.0
    %v882 = vmax.f32 %v620, 0.0
    %v883 = vmax.f32 %v779, 0.0
    %v884 = vmax.f32 %v781, 0.0
    %v885 = vmax.f32 %v302, 0.0
    %v886 = vmax.f32 %v304, 0.0
    %v887 = vmax.f32 %v463, 0.0
    %v888 = vmax.f32 %v465, 0.0
    %v889 = vmax.f32 %v624, 0.0
    %v890 = vmax.f32 %v626, 0.0
    %v891 = vmax.f32 %v785, 0.0
    %v892 = vmax.f32 %v787, 0.0
    %v893 = vmax.f32 %v308, 0.0
    %v894 = vmax.f32 %v310, 0.0
    %v895 = vmax.f32 %v469, 0.0
    %v896 = vmax.f32 %v471, 0.0
    %v897 = vmax.f32 %v630, 0.0
    %v898 = vmax.f32 %v632, 0.0
    %v899 = vmax.f32 %v791, 0.0
    %v900 = vmax.f32 %v793, 0.0
    %v901 = vmax.f32 %v314, 0.0
    %v902 = vmax.f32 %v316, 0.0
    %v903 = vmax.f32 %v475, 0.0
    %v904 = vmax.f32 %v477, 0.0
    %v905 = vmax.f32 %v636, 0.0
    %v906 = vmax.f32 %v638, 0.0
    %v907 = vmax.f32 %v797, 0.0
    %v908 = vmax.f32 %v799, 0.0
    %v909 = vmax.f32 %v320, 0.0
    %v910 = vmax.f32 %v322, 0.0
    %v911 = vmax.f32 %v481, 0.0
    %v912 = vmax.f32 %v483, 0.0
    %v913 = vmax.f32 %v642, 0.0
    %v914 = vmax.f32 %v644, 0.0
    %v915 = vmax.f32 %v803, 0.0
    %v916 = vmax.f32 %v805, 0.0
    %v917 = vmax.f32 %v326, 0.0
    %v918 = vmax.f32 %v328, 0.0
    %v919 = vmax.f32 %v487, 0.0
    %v920 = vmax.f32 %v489, 0.0
    %v921 = vmax.f32 %v648, 0.0
    %v922 = vmax.f32 %v650, 0.0
    %v923 = vmax.f32 %v809, 0.0
    %v924 = vmax.f32 %v811, 0.0
    %v925 = vmax.f32 %v332, 0.0
    %v926 = vmax.f32 %v334, 0.0
    %v927 = vmax.f32 %v493, 0.0
    %v928 = vmax.f32 %v495, 0.0
    %v929 = vmax.f32 %v654, 0.0
    %v930 = vmax.f32 %v656, 0.0
    %v931 = vmax.f32 %v815, 0.0
    %v932 = vmax.f32 %v817, 0.0
    %v933 = vmax.f32 %v338, 0.0
    %v934 = vmax.f32 %v340, 0.0
    %v935 = vmax.f32 %v499, 0.0
    %v936 = vmax.f32 %v501, 0.0
    %v937 = vmax.f32 %v660, 0.0
    %v938 = vmax.f32 %v662, 0.0
    %v939 = vmax.f32 %v821, 0.0
    %v940 = vmax.f32 %v823, 0.0
    %v941 = vmax.f32 %v344, 0.0
    %v942 = vmax.f32 %v346, 0.0
    %v943 = vmax.f32 %v505, 0.0
    %v944 = vmax.f32 %v507, 0.0
    %v945 = vmax.f32 %v666, 0.0
    %v946 = vmax.f32 %v668, 0.0
    %v947 = vmax.f32 %v827, 0.0
    %v948 = vmax.f32 %v829, 0.0
    %v949 = vmax.f32 %v350, 0.0
    %v950 = vmax.f32 %v352, 0.0
    %v951 = vmax.f32 %v511, 0.0
    %v952 = vmax.f32 %v513, 0.0
    %v953 = vmax.f32 %v672, 0.0
    %v954 = vmax.f32 %v674, 0.0
    %v955 = vmax.f32 %v833, 0.0
    %v956 = vmax.f32 %v835, 0.0
    %v957 = vmax.f32 %v356, 0.0
    %v958 = vmax.f32 %v358, 0.0
    %v959 = vmax.f32 %v517, 0.0
    %v960 = vmax.f32 %v519, 0.0
    %v961 = vmax.f32 %v678, 0.0
    %v962 = vmax.f32 %v680, 0.0
    %v963 = vmax.f32 %v839, 0.0
    %v964 = vmax.f32 %v841, 0.0
    %v965 = vmax.f32 %v362, 0.0
    %v966 = vmax.f32 %v364, 0.0
    %v967 = vmax.f32 %v523, 0.0
    %v968 = vmax.f32 %v525, 0.0
    %v969 = vmax.f32 %v684, 0.0
    %v970 = vmax.f32 %v686, 0.0
    %v971 = vmax.f32 %v845, 0.0
    %v972 = vmax.f32 %v847, 0.0
    %v973 = vmax.f32 %v368, 0.0
    %v974 = vmax.f32 %v370, 0.0
    %v975 = vmax.f32 %v529, 0.0
    %v976 = vmax.f32 %v531, 0.0
    %v977 = vmax.f32 %v690, 0.0
    %v978 = vmax.f32 %v692, 0.0
    %v979 = vmax.f32 %v851, 0.0
    %v980 = vmax.f32 %v853, 0.0
    %v981 = vmax.f32 %v374, 0.0
    %v982 = vmax.f32 %v376, 0.0
    %v983 = vmax.f32 %v535, 0.0
    %v984 = vmax.f32 %v537, 0.0
    %v985 = vmax.f32 %v696, 0.0
    %v986 = vmax.f32 %v698, 0.0
    %v987 = vmax.f32 %v857, 0.0
    %v988 = vmax.f32 %v859, 0.0
    %v989 = vld [vmem:[%s3] sm:$0xff]
    %v990 = vld [vmem:[%s3 + $0x8] sm:$0xff]
    %v991 = vld [vmem:[%s3 + $0x10] sm:$0xff]
    %v992 = vld [vmem:[%s3 + $0x18] sm:$0xff]
    %v993 = vld [vmem:[%s3 + $0x20] sm:$0xff]
    %v994 = vld [vmem:[%s3 + $0x28] sm:$0xff]
    %v995 = vld [vmem:[%s3 + $0x30] sm:$0xff]
    %v996 = vld [vmem:[%s3 + $0x38] sm:$0xff]
    %v997 = vld [vmem:[%s3 + $0x40] sm:$0xff]
    %v998 = vld [vmem:[%s3 + $0x48] sm:$0xff]
    %v999 = vld [vmem:[%s3 + $0x50] sm:$0xff]
    %v1000 = vld [vmem:[%s3 + $0x58] sm:$0xff]
    %v1001 = vld [vmem:[%s3 + $0x60] sm:$0xff]
    %v1002 = vld [vmem:[%s3 + $0x68] sm:$0xff]
    %v1003 = vld [vmem:[%s3 + $0x70] sm:$0xff]
    %v1004 = vld [vmem:[%s3 + $0x78] sm:$0xff]
    %v1005 = vld [vmem:[%s4] sm:$0xff]
    %v1006 = vld [vmem:[%s4 + $0x8] sm:$0xff]
    %v1007 = vld [vmem:[%s4 + $0x10] sm:$0xff]
    %v1008 = vld [vmem:[%s4 + $0x18] sm:$0xff]
    %v1009 = vld [vmem:[%s4 + $0x20] sm:$0xff]
    %v1010 = vld [vmem:[%s4 + $0x28] sm:$0xff]
    %v1011 = vld [vmem:[%s4 + $0x30] sm:$0xff]
    %v1012 = vld [vmem:[%s4 + $0x38] sm:$0xff]
    %v1013 = vld [vmem:[%s4 + $0x40] sm:$0xff]
    %v1014 = vld [vmem:[%s4 + $0x48] sm:$0xff]
    %v1015 = vld [vmem:[%s4 + $0x50] sm:$0xff]
    %v1016 = vld [vmem:[%s4 + $0x58] sm:$0xff]
    %v1017 = vld [vmem:[%s4 + $0x60] sm:$0xff]
    %v1018 = vld [vmem:[%s4 + $0x68] sm:$0xff]
    %v1019 = vld [vmem:[%s4 + $0x70] sm:$0xff]
    %v1020 = vld [vmem:[%s4 + $0x78] sm:$0xff]
    %1022 = vset.pattern.permute.xlu0 0
    %1023 = vperm.xlu0 %1022, %v1005
    %v1024 = vpop.permute.xlu0 %1023
    %1027 = vset.pattern.permute.xlu0 0
    %1028 = vperm.xlu0 %1027, %v1006
    %v1029 = vpop.permute.xlu0 %1028
    %1032 = vset.pattern.permute.xlu0 0
    %1033 = vperm.xlu0 %1032, %v1007
    %v1034 = vpop.permute.xlu0 %1033
    %1037 = vset.pattern.permute.xlu0 0
    %1038 = vperm.xlu0 %1037, %v1008
    %v1039 = vpop.permute.xlu0 %1038
    %1042 = vset.pattern.permute.xlu0 0
    %1043 = vperm.xlu0 %1042, %v1009
    %v1044 = vpop.permute.xlu0 %1043
    %1047 = vset.pattern.permute.xlu0 0
    %1048 = vperm.xlu0 %1047, %v1010
    %v1049 = vpop.permute.xlu0 %1048
    %1052 = vset.pattern.permute.xlu0 0
    %1053 = vperm.xlu0 %1052, %v1011
    %v1054 = vpop.permute.xlu0 %1053
    %1057 = vset.pattern.permute.xlu0 0
    %1058 = vperm.xlu0 %1057, %v1012
    %v1059 = vpop.permute.xlu0 %1058
    %1062 = vset.pattern.permute.xlu0 0
    %1063 = vperm.xlu0 %1062, %v1013
    %v1064 = vpop.permute.xlu0 %1063
    %1067 = vset.pattern.permute.xlu0 0
    %1068 = vperm.xlu0 %1067, %v1014
    %v1069 = vpop.permute.xlu0 %1068
    %1072 = vset.pattern.permute.xlu0 0
    %1073 = vperm.xlu0 %1072, %v1015
    %v1074 = vpop.permute.xlu0 %1073
    %1077 = vset.pattern.permute.xlu0 0
    %1078 = vperm.xlu0 %1077, %v1016
    %v1079 = vpop.permute.xlu0 %1078
    %1082 = vset.pattern.permute.xlu0 0
    %1083 = vperm.xlu0 %1082, %v1017
    %v1084 = vpop.permute.xlu0 %1083
    %1087 = vset.pattern.permute.xlu0 0
    %1088 = vperm.xlu0 %1087, %v1018
    %v1089 = vpop.permute.xlu0 %1088
    %1092 = vset.pattern.permute.xlu0 0
    %1093 = vperm.xlu0 %1092, %v1019
    %v1094 = vpop.permute.xlu0 %1093
    %1097 = vset.pattern.permute.xlu0 0
    %1098 = vperm.xlu0 %1097, %v1020
    %v1099 = vpop.permute.xlu0 %1098
    %1101 = vmatprep.subr.mxu0 %v862
    %1102 = vmatpush1.msra.mxu0 %v861
    %1103 = vmatprep.subr.mxu0 %v870
    %1104 = vmatpush1.msra.mxu0 %v869
    %1105 = vmatprep.subr.mxu0 %v878
    %1106 = vmatpush1.msra.mxu0 %v877
    %1107 = vmatprep.subr.mxu0 %v886
    %1108 = vmatpush1.msra.mxu0 %v885
    %1109 = vmatprep.subr.mxu0 %v894
    %1110 = vmatpush1.msra.mxu0 %v893
    %1111 = vmatprep.subr.mxu0 %v902
    %1112 = vmatpush1.msra.mxu0 %v901
    %1113 = vmatprep.subr.mxu0 %v910
    %1114 = vmatpush1.msra.mxu0 %v909
    %1115 = vmatprep.subr.mxu0 %v918
    %1116 = vmatpush1.msra.mxu0 %v917
    %1117 = vmatprep.subr.mxu0 %v926
    %1118 = vmatpush1.msra.mxu0 %v925
    %1119 = vmatprep.subr.mxu0 %v934
    %1120 = vmatpush1.msra.mxu0 %v933
    %1121 = vmatprep.subr.mxu0 %v942
    %1122 = vmatpush1.msra.mxu0 %v941
    %1123 = vmatprep.subr.mxu0 %v950
    %1124 = vmatpush1.msra.mxu0 %v949
    %1125 = vmatprep.subr.mxu0 %v958
    %1126 = vmatpush1.msra.mxu0 %v957
    %1127 = vmatprep.subr.mxu0 %v966
    %1128 = vmatpush1.msra.mxu0 %v965
    %1129 = vmatprep.subr.mxu0 %v974
    %1130 = vmatpush1.msra.mxu0 %v973
    %1131 = vmatprep.subr.mxu0 %v982
    %1132 = vmatpush1.msra.mxu0 %v981
    %1133 = vmatprep.subr.mxu0 0.0
    %1134 = vmatpush1.msra.mxu0 0.0
    %1135 = vmatprep.subr.mxu0 0.0
    %1136 = vmatpush1.msra.mxu0 0.0
    %1137 = vmatprep.subr.mxu0 0.0
    %1138 = vmatpush1.msra.mxu0 0.0
    %1139 = vmatprep.subr.mxu0 0.0
    %1140 = vmatpush1.msra.mxu0 0.0
    %1141 = vmatprep.subr.mxu0 0.0
    %1142 = vmatpush1.msra.mxu0 0.0
    %1143 = vmatprep.subr.mxu0 0.0
    %1144 = vmatpush1.msra.mxu0 0.0
    %1145 = vmatprep.subr.mxu0 0.0
    %1146 = vmatpush1.msra.mxu0 0.0
    %1147 = vmatprep.subr.mxu0 0.0
    %1148 = vmatpush1.msra.mxu0 0.0
    %1149 = vmatprep.subr.mxu0 0.0
    %1150 = vmatpush1.msra.mxu0 0.0
    %1151 = vmatprep.subr.mxu0 0.0
    %1152 = vmatpush1.msra.mxu0 0.0
    %1153 = vmatprep.subr.mxu0 0.0
    %1154 = vmatpush1.msra.mxu0 0.0
    %1155 = vmatprep.subr.mxu0 0.0
    %1156 = vmatpush1.msra.mxu0 0.0
    %1157 = vmatprep.subr.mxu0 0.0
    %1158 = vmatpush1.msra.mxu0 0.0
    %1159 = vmatprep.subr.mxu0 0.0
    %1160 = vmatpush1.msra.mxu0 0.0
    %1161 = vmatprep.subr.mxu0 0.0
    %1162 = vmatpush1.msra.mxu0 0.0
    %1163 = vmatprep.subr.mxu0 0.0
    %1164 = vmatpush1.msra.mxu0 0.0
    %1165 = vmatprep.mubr.f32.mxu0 0.0
    %1166 = vmatmul.mubr.f32.gmra.mrb[0].mxu0 %v989
    %v1167 = vpop.f32.mrb[0].mxu0
    %v1168 = vadd.f32 %v1024, %v1167
    %v1169 = vpop.f32.mrb[0].mxu0
    %v1170 = vadd.f32 %v1024, %v1169
    %1171 = vmatprep.mubr.f32.mxu0 0.0
    %1172 = vmatmul.mubr.f32.gmra.mrb[0].mxu0 %v990
    %v1173 = vpop.f32.mrb[0].mxu0
    %v1174 = vadd.f32 %v1029, %v1173
    %v1175 = vpop.f32.mrb[0].mxu0
    %v1176 = vadd.f32 %v1029, %v1175
    %1177 = vmatprep.mubr.f32.mxu0 0.0
    %1178 = vmatmul.mubr.f32.gmra.mrb[0].mxu0 %v991
    %v1179 = vpop.f32.mrb[0].mxu0
    %v1180 = vadd.f32 %v1034, %v1179
    %v1181 = vpop.f32.mrb[0].mxu0
    %v1182 = vadd.f32 %v1034, %v1181
    %1183 = vmatprep.mubr.f32.mxu0 0.0
    %1184 = vmatmul.mubr.f32.gmra.mrb[0].mxu0 %v992
    %v1185 = vpop.f32.mrb[0].mxu0
    %v1186 = vadd.f32 %v1039, %v1185
    %v1187 = vpop.f32.mrb[0].mxu0
    %v1188 = vadd.f32 %v1039, %v1187
    %1189 = vmatprep.mubr.f32.mxu0 0.0
    %1190 = vmatmul.mubr.f32.gmra.mrb[0].mxu0 %v993
    %v1191 = vpop.f32.mrb[0].mxu0
    %v1192 = vadd.f32 %v1044, %v1191
    %v1193 = vpop.f32.mrb[0].mxu0
    %v1194 = vadd.f32 %v1044, %v1193
    %1195 = vmatprep.mubr.f32.mxu0 0.0
    %1196 = vmatmul.mubr.f32.gmra.mrb[0].mxu0 %v994
    %v1197 = vpop.f32.mrb[0].mxu0
    %v1198 = vadd.f32 %v1049, %v1197
    %v1199 = vpop.f32.mrb[0].mxu0
    %v1200 = vadd.f32 %v1049, %v1199
    %1201 = vmatprep.mubr.f32.mxu0 0.0
    %1202 = vmatmul.mubr.f32.gmra.mrb[0].mxu0 %v995
    %v1203 = vpop.f32.mrb[0].mxu0
    %v1204 = vadd.f32 %v1054, %v1203
    %v1205 = vpop.f32.mrb[0].mxu0
    %v1206 = vadd.f32 %v1054, %v1205
    %1207 = vmatprep.mubr.f32.mxu0 0.0
    %1208 = vmatmul.mubr.f32.gmra.mrb[0].mxu0 %v996
    %v1209 = vpop.f32.mrb[0].mxu0
    %v1210 = vadd.f32 %v1059, %v1209
    %v1211 = vpop.f32.mrb[0].mxu0
    %v1212 = vadd.f32 %v1059, %v1211
    %1213 = vmatprep.mubr.f32.mxu0 0.0
    %1214 = vmatmul.mubr.f32.gmra.mrb[0].mxu0 %v997
    %v1215 = vpop.f32.mrb[0].mxu0
    %v1216 = vadd.f32 %v1064, %v1215
    %v1217 = vpop.f32.mrb[0].mxu0
    %v1218 = vadd.f32 %v1064, %v1217
    %1219 = vmatprep.mubr.f32.mxu0 0.0
    %1220 = vmatmul.mubr.f32.gmra.mrb[0].mxu0 %v998
    %v1221 = vpop.f32.mrb[0].mxu0
    %v1222 = vadd.f32 %v1069, %v1221
    %v1223 = vpop.f32.mrb[0].mxu0
    %v1224 = vadd.f32 %v1069, %v1223
    %1225 = vmatprep.mubr.f32.mxu0 0.0
    %1226 = vmatmul.mubr.f32.gmra.mrb[0].mxu0 %v999
    %v1227 = vpop.f32.mrb[0].mxu0
    %v1228 = vadd.f32 %v1074, %v1227
    %v1229 = vpop.f32.mrb[0].mxu0
    %v1230 = vadd.f32 %v1074, %v1229
    %1231 = vmatprep.mubr.f32.mxu0 0.0
    %1232 = vmatmul.mubr.f32.gmra.mrb[0].mxu0 %v1000
    %v1233 = vpop.f32.mrb[0].mxu0
    %v1234 = vadd.f32 %v1079, %v1233
    %v1235 = vpop.f32.mrb[0].mxu0
    %v1236 = vadd.f32 %v1079, %v1235
    %1237 = vmatprep.mubr.f32.mxu0 0.0
    %1238 = vmatmul.mubr.f32.gmra.mrb[0].mxu0 %v1001
    %v1239 = vpop.f32.mrb[0].mxu0
    %v1240 = vadd.f32 %v1084, %v1239
    %v1241 = vpop.f32.mrb[0].mxu0
    %v1242 = vadd.f32 %v1084, %v1241
    %1243 = vmatprep.mubr.f32.mxu0 0.0
    %1244 = vmatmul.mubr.f32.gmra.mrb[0].mxu0 %v1002
    %v1245 = vpop.f32.mrb[0].mxu0
    %v1246 = vadd.f32 %v1089, %v1245
    %v1247 = vpop.f32.mrb[0].mxu0
    %v1248 = vadd.f32 %v1089, %v1247
    %1249 = vmatprep.mubr.f32.mxu0 0.0
    %1250 = vmatmul.mubr.f32.gmra.mrb[0].mxu0 %v1003
    %v1251 = vpop.f32.mrb[0].mxu0
    %v1252 = vadd.f32 %v1094, %v1251
    %v1253 = vpop.f32.mrb[0].mxu0
    %v1254 = vadd.f32 %v1094, %v1253
    %1255 = vmatprep.mubr.f32.mxu0 0.0
    %1256 = vmatmul.mubr.f32.gmra.mrb[0].mxu0 %v1004
    %v1257 = vpop.f32.mrb[0].mxu0
    %v1258 = vadd.f32 %v1099, %v1257
    %v1259 = vpop.f32.mrb[0].mxu0
    %v1260 = vadd.f32 %v1099, %v1259
    %1261 = vdwg.mxu0
    %1262 = vmatprep.subr.mxu0 %v864
    %1263 = vmatpush1.msra.mxu0 %v863
    %1264 = vmatprep.subr.mxu0 %v872
    %1265 = vmatpush1.msra.mxu0 %v871
    %1266 = vmatprep.subr.mxu0 %v880
    %1267 = vmatpush1.msra.mxu0 %v879
    %1268 = vmatprep.subr.mxu0 %v888
    %1269 = vmatpush1.msra.mxu0 %v887
    %1270 = vmatprep.subr.mxu0 %v896
    %1271 = vmatpush1.msra.mxu0 %v895
    %1272 = vmatprep.subr.mxu0 %v904
    %1273 = vmatpush1.msra.mxu0 %v903
    %1274 = vmatprep.subr.mxu0 %v912
    %1275 = vmatpush1.msra.mxu0 %v911
    %1276 = vmatprep.subr.mxu0 %v920
    %1277 = vmatpush1.msra.mxu0 %v919
    %1278 = vmatprep.subr.mxu0 %v928
    %1279 = vmatpush1.msra.mxu0 %v927
    %1280 = vmatprep.subr.mxu0 %v936
    %1281 = vmatpush1.msra.mxu0 %v935
    %1282 = vmatprep.subr.mxu0 %v944
    %1283 = vmatpush1.msra.mxu0 %v943
    %1284 = vmatprep.subr.mxu0 %v952
    %1285 = vmatpush1.msra.mxu0 %v951
    %1286 = vmatprep.subr.mxu0 %v960
    %1287 = vmatpush1.msra.mxu0 %v959
    %1288 = vmatprep.subr.mxu0 %v968
    %1289 = vmatpush1.msra.mxu0 %v967
    %1290 = vmatprep.subr.mxu0 %v976
    %1291 = vmatpush1.msra.mxu0 %v975
    %1292 = vmatprep.subr.mxu0 %v984
    %1293 = vmatpush1.msra.mxu0 %v983
    %1294 = vmatprep.subr.mxu0 0.0
    %1295 = vmatpush1.msra.mxu0 0.0
    %1296 = vmatprep.subr.mxu0 0.0
    %1297 = vmatpush1.msra.mxu0 0.0
    %1298 = vmatprep.subr.mxu0 0.0
    %1299 = vmatpush1.msra.mxu0 0.0
    %1300 = vmatprep.subr.mxu0 0.0
    %1301 = vmatpush1.msra.mxu0 0.0
    %1302 = vmatprep.subr.mxu0 0.0
    %1303 = vmatpush1.msra.mxu0 0.0
    %1304 = vmatprep.subr.mxu0 0.0
    %1305 = vmatpush1.msra.mxu0 0.0
    %1306 = vmatprep.subr.mxu0 0.0
    %1307 = vmatpush1.msra.mxu0 0.0
    %1308 = vmatprep.subr.mxu0 0.0
    %1309 = vmatpush1.msra.mxu0 0.0
    %1310 = vmatprep.subr.mxu0 0.0
    %1311 = vmatpush1.msra.mxu0 0.0
    %1312 = vmatprep.subr.mxu0 0.0
    %1313 = vmatpush1.msra.mxu0 0.0
    %1314 = vmatprep.subr.mxu0 0.0
    %1315 = vmatpush1.msra.mxu0 0.0
    %1316 = vmatprep.subr.mxu0 0.0
    %1317 = vmatpush1.msra.mxu0 0.0
    %1318 = vmatprep.subr.mxu0 0.0
    %1319 = vmatpush1.msra.mxu0 0.0
    %1320 = vmatprep.subr.mxu0 0.0
    %1321 = vmatpush1.msra.mxu0 0.0
    %1322 = vmatprep.subr.mxu0 0.0
    %1323 = vmatpush1.msra.mxu0 0.0
    %1324 = vmatprep.subr.mxu0 0.0
    %1325 = vmatpush1.msra.mxu0 0.0
    %1326 = vmatprep.mubr.f32.mxu0 0.0
    %1327 = vmatmul.mubr.f32.gmra.mrb[0].mxu0 %v989
    %v1328 = vpop.f32.mrb[0].mxu0
    %v1329 = vadd.f32 %v1024, %v1328
    %v1330 = vpop.f32.mrb[0].mxu0
    %v1331 = vadd.f32 %v1024, %v1330
    %1332 = vmatprep.mubr.f32.mxu0 0.0
    %1333 = vmatmul.mubr.f32.gmra.mrb[0].mxu0 %v990
    %v1334 = vpop.f32.mrb[0].mxu0
    %v1335 = vadd.f32 %v1029, %v1334
    %v1336 = vpop.f32.mrb[0].mxu0
    %v1337 = vadd.f32 %v1029, %v1336
    %1338 = vmatprep.mubr.f32.mxu0 0.0
    %1339 = vmatmul.mubr.f32.gmra.mrb[0].mxu0 %v991
    %v1340 = vpop.f32.mrb[0].mxu0
    %v1341 = vadd.f32 %v1034, %v1340
    %v1342 = vpop.f32.mrb[0].mxu0
    %v1343 = vadd.f32 %v1034, %v1342
    %1344 = vmatprep.mubr.f32.mxu0 0.0
    %1345 = vmatmul.mubr.f32.gmra.mrb[0].mxu0 %v992
    %v1346 = vpop.f32.mrb[0].mxu0
    %v1347 = vadd.f32 %v1039, %v1346
    %v1348 = vpop.f32.mrb[0].mxu0
    %v1349 = vadd.f32 %v1039, %v1348
    %1350 = vmatprep.mubr.f32.mxu0 0.0
    %1351 = vmatmul.mubr.f32.gmra.mrb[0].mxu0 %v993
    %v1352 = vpop.f32.mrb[0].mxu0
    %v1353 = vadd.f32 %v1044, %v1352
    %v1354 = vpop.f32.mrb[0].mxu0
    %v1355 = vadd.f32 %v1044, %v1354
    %1356 = vmatprep.mubr.f32.mxu0 0.0
    %1357 = vmatmul.mubr.f32.gmra.mrb[0].mxu0 %v994
    %v1358 = vpop.f32.mrb[0].mxu0
    %v1359 = vadd.f32 %v1049, %v1358
    %v1360 = vpop.f32.mrb[0].mxu0
    %v1361 = vadd.f32 %v1049, %v1360
    %1362 = vmatprep.mubr.f32.mxu0 0.0
    %1363 = vmatmul.mubr.f32.gmra.mrb[0].mxu0 %v995
    %v1364 = vpop.f32.mrb[0].mxu0
    %v1365 = vadd.f32 %v1054, %v1364
    %v1366 = vpop.f32.mrb[0].mxu0
    %v1367 = vadd.f32 %v1054, %v1366
    %1368 = vmatprep.mubr.f32.mxu0 0.0
    %1369 = vmatmul.mubr.f32.gmra.mrb[0].mxu0 %v996
    %v1370 = vpop.f32.mrb[0].mxu0
    %v1371 = vadd.f32 %v1059, %v1370
    %v1372 = vpop.f32.mrb[0].mxu0
    %v1373 = vadd.f32 %v1059, %v1372
    %1374 = vmatprep.mubr.f32.mxu0 0.0
    %1375 = vmatmul.mubr.f32.gmra.mrb[0].mxu0 %v997
    %v1376 = vpop.f32.mrb[0].mxu0
    %v1377 = vadd.f32 %v1064, %v1376
    %v1378 = vpop.f32.mrb[0].mxu0
    %v1379 = vadd.f32 %v1064, %v1378
    %1380 = vmatprep.mubr.f32.mxu0 0.0
    %1381 = vmatmul.mubr.f32.gmra.mrb[0].mxu0 %v998
    %v1382 = vpop.f32.mrb[0].mxu0
    %v1383 = vadd.f32 %v1069, %v1382
    %v1384 = vpop.f32.mrb[0].mxu0
    %v1385 = vadd.f32 %v1069, %v1384
    %1386 = vmatprep.mubr.f32.mxu0 0.0
    %1387 = vmatmul.mubr.f32.gmra.mrb[0].mxu0 %v999
    %v1388 = vpop.f32.mrb[0].mxu0
    %v1389 = vadd.f32 %v1074, %v1388
    %v1390 = vpop.f32.mrb[0].mxu0
    %v1391 = vadd.f32 %v1074, %v1390
    %1392 = vmatprep.mubr.f32.mxu0 0.0
    %1393 = vmatmul.mubr.f32.gmra.mrb[0].mxu0 %v1000
    %v1394 = vpop.f32.mrb[0].mxu0
    %v1395 = vadd.f32 %v1079, %v1394
    %v1396 = vpop.f32.mrb[0].mxu0
    %v1397 = vadd.f32 %v1079, %v1396
    %1398 = vmatprep.mubr.f32.mxu0 0.0
    %1399 = vmatmul.mubr.f32.gmra.mrb[0].mxu0 %v1001
    %v1400 = vpop.f32.mrb[0].mxu0
    %v1401 = vadd.f32 %v1084, %v1400
    %v1402 = vpop.f32.mrb[0].mxu0
    %v1403 = vadd.f32 %v1084, %v1402
    %1404 = vmatprep.mubr.f32.mxu0 0.0
    %1405 = vmatmul.mubr.f32.gmra.mrb[0].mxu0 %v1002
    %v1406 = vpop.f32.mrb[0].mxu0
    %v1407 = vadd.f32 %v1089, %v1406
    %v1408 = vpop.f32.mrb[0].mxu0
    %v1409 = vadd.f32 %v1089, %v1408
    %1410 = vmatprep.mubr.f32.mxu0 0.0
    %1411 = vmatmul.mubr.f32.gmra.mrb[0].mxu0 %v1003
    %v1412 = vpop.f32.mrb[0].mxu0
    %v1413 = vadd.f32 %v1094, %v1412
    %v1414 = vpop.f32.mrb[0].mxu0
    %v1415 = vadd.f32 %v1094, %v1414
    %1416 = vmatprep.mubr.f32.mxu0 0.0
    %1417 = vmatmul.mubr.f32.gmra.mrb[0].mxu0 %v1004
    %v1418 = vpop.f32.mrb[0].mxu0
    %v1419 = vadd.f32 %v1099, %v1418
    %v1420 = vpop.f32.mrb[0].mxu0
    %v1421 = vadd.f32 %v1099, %v1420
    %1422 = vdwg.mxu0
    %1423 = vmatprep.subr.mxu0 %v866
    %1424 = vmatpush1.msra.mxu0 %v865
    %1425 = vmatprep.subr.mxu0 %v874
    %1426 = vmatpush1.msra.mxu0 %v873
    %1427 = vmatprep.subr.mxu0 %v882
    %1428 = vmatpush1.msra.mxu0 %v881
    %1429 = vmatprep.subr.mxu0 %v890
    %1430 = vmatpush1.msra.mxu0 %v889
    %1431 = vmatprep.subr.mxu0 %v898
    %1432 = vmatpush1.msra.mxu0 %v897
    %1433 = vmatprep.subr.mxu0 %v906
    %1434 = vmatpush1.msra.mxu0 %v905
    %1435 = vmatprep.subr.mxu0 %v914
    %1436 = vmatpush1.msra.mxu0 %v913
    %1437 = vmatprep.subr.mxu0 %v922
    %1438 = vmatpush1.msra.mxu0 %v921
    %1439 = vmatprep.subr.mxu0 %v930
    %1440 = vmatpush1.msra.mxu0 %v929
    %1441 = vmatprep.subr.mxu0 %v938
    %1442 = vmatpush1.msra.mxu0 %v937
    %1443 = vmatprep.subr.mxu0 %v946
    %1444 = vmatpush1.msra.mxu0 %v945
    %1445 = vmatprep.subr.mxu0 %v954
    %1446 = vmatpush1.msra.mxu0 %v953
    %1447 = vmatprep.subr.mxu0 %v962
    %1448 = vmatpush1.msra.mxu0 %v961
    %1449 = vmatprep.subr.mxu0 %v970
    %1450 = vmatpush1.msra.mxu0 %v969
    %1451 = vmatprep.subr.mxu0 %v978
    %1452 = vmatpush1.msra.mxu0 %v977
    %1453 = vmatprep.subr.mxu0 %v986
    %1454 = vmatpush1.msra.mxu0 %v985
    %1455 = vmatprep.subr.mxu0 0.0
    %1456 = vmatpush1.msra.mxu0 0.0
    %1457 = vmatprep.subr.mxu0 0.0
    %1458 = vmatpush1.msra.mxu0 0.0
    %1459 = vmatprep.subr.mxu0 0.0
    %1460 = vmatpush1.msra.mxu0 0.0
    %1461 = vmatprep.subr.mxu0 0.0
    %1462 = vmatpush1.msra.mxu0 0.0
    %1463 = vmatprep.subr.mxu0 0.0
    %1464 = vmatpush1.msra.mxu0 0.0
    %1465 = vmatprep.subr.mxu0 0.0
    %1466 = vmatpush1.msra.mxu0 0.0
    %1467 = vmatprep.subr.mxu0 0.0
    %1468 = vmatpush1.msra.mxu0 0.0
    %1469 = vmatprep.subr.mxu0 0.0
    %1470 = vmatpush1.msra.mxu0 0.0
    %1471 = vmatprep.subr.mxu0 0.0
    %1472 = vmatpush1.msra.mxu0 0.0
    %1473 = vmatprep.subr.mxu0 0.0
    %1474 = vmatpush1.msra.mxu0 0.0
    %1475 = vmatprep.subr.mxu0 0.0
    %1476 = vmatpush1.msra.mxu0 0.0
    %1477 = vmatprep.subr.mxu0 0.0
    %1478 = vmatpush1.msra.mxu0 0.0
    %1479 = vmatprep.subr.mxu0 0.0
    %1480 = vmatpush1.msra.mxu0 0.0
    %1481 = vmatprep.subr.mxu0 0.0
    %1482 = vmatpush1.msra.mxu0 0.0
    %1483 = vmatprep.subr.mxu0 0.0
    %1484 = vmatpush1.msra.mxu0 0.0
    %1485 = vmatprep.subr.mxu0 0.0
    %1486 = vmatpush1.msra.mxu0 0.0
    %1487 = vmatprep.mubr.f32.mxu0 0.0
    %1488 = vmatmul.mubr.f32.gmra.mrb[0].mxu0 %v989
    %v1489 = vpop.f32.mrb[0].mxu0
    %v1490 = vadd.f32 %v1024, %v1489
    %v1491 = vpop.f32.mrb[0].mxu0
    %v1492 = vadd.f32 %v1024, %v1491
    %1493 = vmatprep.mubr.f32.mxu0 0.0
    %1494 = vmatmul.mubr.f32.gmra.mrb[0].mxu0 %v990
    %v1495 = vpop.f32.mrb[0].mxu0
    %v1496 = vadd.f32 %v1029, %v1495
    %v1497 = vpop.f32.mrb[0].mxu0
    %v1498 = vadd.f32 %v1029, %v1497
    %1499 = vmatprep.mubr.f32.mxu0 0.0
    %1500 = vmatmul.mubr.f32.gmra.mrb[0].mxu0 %v991
    %v1501 = vpop.f32.mrb[0].mxu0
    %v1502 = vadd.f32 %v1034, %v1501
    %v1503 = vpop.f32.mrb[0].mxu0
    %v1504 = vadd.f32 %v1034, %v1503
    %1505 = vmatprep.mubr.f32.mxu0 0.0
    %1506 = vmatmul.mubr.f32.gmra.mrb[0].mxu0 %v992
    %v1507 = vpop.f32.mrb[0].mxu0
    %v1508 = vadd.f32 %v1039, %v1507
    %v1509 = vpop.f32.mrb[0].mxu0
    %v1510 = vadd.f32 %v1039, %v1509
    %1511 = vmatprep.mubr.f32.mxu0 0.0
    %1512 = vmatmul.mubr.f32.gmra.mrb[0].mxu0 %v993
    %v1513 = vpop.f32.mrb[0].mxu0
    %v1514 = vadd.f32 %v1044, %v1513
    %v1515 = vpop.f32.mrb[0].mxu0
    %v1516 = vadd.f32 %v1044, %v1515
    %1517 = vmatprep.mubr.f32.mxu0 0.0
    %1518 = vmatmul.mubr.f32.gmra.mrb[0].mxu0 %v994
    %v1519 = vpop.f32.mrb[0].mxu0
    %v1520 = vadd.f32 %v1049, %v1519
    %v1521 = vpop.f32.mrb[0].mxu0
    %v1522 = vadd.f32 %v1049, %v1521
    %1523 = vmatprep.mubr.f32.mxu0 0.0
    %1524 = vmatmul.mubr.f32.gmra.mrb[0].mxu0 %v995
    %v1525 = vpop.f32.mrb[0].mxu0
    %v1526 = vadd.f32 %v1054, %v1525
    %v1527 = vpop.f32.mrb[0].mxu0
    %v1528 = vadd.f32 %v1054, %v1527
    %1529 = vmatprep.mubr.f32.mxu0 0.0
    %1530 = vmatmul.mubr.f32.gmra.mrb[0].mxu0 %v996
    %v1531 = vpop.f32.mrb[0].mxu0
    %v1532 = vadd.f32 %v1059, %v1531
    %v1533 = vpop.f32.mrb[0].mxu0
    %v1534 = vadd.f32 %v1059, %v1533
    %1535 = vmatprep.mubr.f32.mxu0 0.0
    %1536 = vmatmul.mubr.f32.gmra.mrb[0].mxu0 %v997
    %v1537 = vpop.f32.mrb[0].mxu0
    %v1538 = vadd.f32 %v1064, %v1537
    %v1539 = vpop.f32.mrb[0].mxu0
    %v1540 = vadd.f32 %v1064, %v1539
    %1541 = vmatprep.mubr.f32.mxu0 0.0
    %1542 = vmatmul.mubr.f32.gmra.mrb[0].mxu0 %v998
    %v1543 = vpop.f32.mrb[0].mxu0
    %v1544 = vadd.f32 %v1069, %v1543
    %v1545 = vpop.f32.mrb[0].mxu0
    %v1546 = vadd.f32 %v1069, %v1545
    %1547 = vmatprep.mubr.f32.mxu0 0.0
    %1548 = vmatmul.mubr.f32.gmra.mrb[0].mxu0 %v999
    %v1549 = vpop.f32.mrb[0].mxu0
    %v1550 = vadd.f32 %v1074, %v1549
    %v1551 = vpop.f32.mrb[0].mxu0
    %v1552 = vadd.f32 %v1074, %v1551
    %1553 = vmatprep.mubr.f32.mxu0 0.0
    %1554 = vmatmul.mubr.f32.gmra.mrb[0].mxu0 %v1000
    %v1555 = vpop.f32.mrb[0].mxu0
    %v1556 = vadd.f32 %v1079, %v1555
    %v1557 = vpop.f32.mrb[0].mxu0
    %v1558 = vadd.f32 %v1079, %v1557
    %1559 = vmatprep.mubr.f32.mxu0 0.0
    %1560 = vmatmul.mubr.f32.gmra.mrb[0].mxu0 %v1001
    %v1561 = vpop.f32.mrb[0].mxu0
    %v1562 = vadd.f32 %v1084, %v1561
    %v1563 = vpop.f32.mrb[0].mxu0
    %v1564 = vadd.f32 %v1084, %v1563
    %1565 = vmatprep.mubr.f32.mxu0 0.0
    %1566 = vmatmul.mubr.f32.gmra.mrb[0].mxu0 %v1002
    %v1567 = vpop.f32.mrb[0].mxu0
    %v1568 = vadd.f32 %v1089, %v1567
    %v1569 = vpop.f32.mrb[0].mxu0
    %v1570 = vadd.f32 %v1089, %v1569
    %1571 = vmatprep.mubr.f32.mxu0 0.0
    %1572 = vmatmul.mubr.f32.gmra.mrb[0].mxu0 %v1003
    %v1573 = vpop.f32.mrb[0].mxu0
    %v1574 = vadd.f32 %v1094, %v1573
    %v1575 = vpop.f32.mrb[0].mxu0
    %v1576 = vadd.f32 %v1094, %v1575
    %1577 = vmatprep.mubr.f32.mxu0 0.0
    %1578 = vmatmul.mubr.f32.gmra.mrb[0].mxu0 %v1004
    %v1579 = vpop.f32.mrb[0].mxu0
    %v1580 = vadd.f32 %v1099, %v1579
    %v1581 = vpop.f32.mrb[0].mxu0
    %v1582 = vadd.f32 %v1099, %v1581
    %1583 = vdwg.mxu0
    %1584 = vmatprep.subr.mxu0 %v868
    %1585 = vmatpush1.msra.mxu0 %v867
    %1586 = vmatprep.subr.mxu0 %v876
    %1587 = vmatpush1.msra.mxu0 %v875
    %1588 = vmatprep.subr.mxu0 %v884
    %1589 = vmatpush1.msra.mxu0 %v883
    %1590 = vmatprep.subr.mxu0 %v892
    %1591 = vmatpush1.msra.mxu0 %v891
    %1592 = vmatprep.subr.mxu0 %v900
    %1593 = vmatpush1.msra.mxu0 %v899
    %1594 = vmatprep.subr.mxu0 %v908
    %1595 = vmatpush1.msra.mxu0 %v907
    %1596 = vmatprep.subr.mxu0 %v916
    %1597 = vmatpush1.msra.mxu0 %v915
    %1598 = vmatprep.subr.mxu0 %v924
    %1599 = vmatpush1.msra.mxu0 %v923
    %1600 = vmatprep.subr.mxu0 %v932
    %1601 = vmatpush1.msra.mxu0 %v931
    %1602 = vmatprep.subr.mxu0 %v940
    %1603 = vmatpush1.msra.mxu0 %v939
    %1604 = vmatprep.subr.mxu0 %v948
    %1605 = vmatpush1.msra.mxu0 %v947
    %1606 = vmatprep.subr.mxu0 %v956
    %1607 = vmatpush1.msra.mxu0 %v955
    %1608 = vmatprep.subr.mxu0 %v964
    %1609 = vmatpush1.msra.mxu0 %v963
    %1610 = vmatprep.subr.mxu0 %v972
    %1611 = vmatpush1.msra.mxu0 %v971
    %1612 = vmatprep.subr.mxu0 %v980
    %1613 = vmatpush1.msra.mxu0 %v979
    %1614 = vmatprep.subr.mxu0 %v988
    %1615 = vmatpush1.msra.mxu0 %v987
    %1616 = vmatprep.subr.mxu0 0.0
    %1617 = vmatpush1.msra.mxu0 0.0
    %1618 = vmatprep.subr.mxu0 0.0
    %1619 = vmatpush1.msra.mxu0 0.0
    %1620 = vmatprep.subr.mxu0 0.0
    %1621 = vmatpush1.msra.mxu0 0.0
    %1622 = vmatprep.subr.mxu0 0.0
    %1623 = vmatpush1.msra.mxu0 0.0
    %1624 = vmatprep.subr.mxu0 0.0
    %1625 = vmatpush1.msra.mxu0 0.0
    %1626 = vmatprep.subr.mxu0 0.0
    %1627 = vmatpush1.msra.mxu0 0.0
    %1628 = vmatprep.subr.mxu0 0.0
    %1629 = vmatpush1.msra.mxu0 0.0
    %1630 = vmatprep.subr.mxu0 0.0
    %1631 = vmatpush1.msra.mxu0 0.0
    %1632 = vmatprep.subr.mxu0 0.0
    %1633 = vmatpush1.msra.mxu0 0.0
    %1634 = vmatprep.subr.mxu0 0.0
    %1635 = vmatpush1.msra.mxu0 0.0
    %1636 = vmatprep.subr.mxu0 0.0
    %1637 = vmatpush1.msra.mxu0 0.0
    %1638 = vmatprep.subr.mxu0 0.0
    %1639 = vmatpush1.msra.mxu0 0.0
    %1640 = vmatprep.subr.mxu0 0.0
    %1641 = vmatpush1.msra.mxu0 0.0
    %1642 = vmatprep.subr.mxu0 0.0
    %1643 = vmatpush1.msra.mxu0 0.0
    %1644 = vmatprep.subr.mxu0 0.0
    %1645 = vmatpush1.msra.mxu0 0.0
    %1646 = vmatprep.subr.mxu0 0.0
    %1647 = vmatpush1.msra.mxu0 0.0
    %1648 = vmatprep.mubr.f32.mxu0 0.0
    %1649 = vmatmul.mubr.f32.gmra.mrb[0].mxu0 %v989
    %v1650 = vpop.f32.mrb[0].mxu0
    %v1651 = vadd.f32 %v1024, %v1650
    %v1652 = vpop.f32.mrb[0].mxu0
    %v1653 = vadd.f32 %v1024, %v1652
    %1654 = vmatprep.mubr.f32.mxu0 0.0
    %1655 = vmatmul.mubr.f32.gmra.mrb[0].mxu0 %v990
    %v1656 = vpop.f32.mrb[0].mxu0
    %v1657 = vadd.f32 %v1029, %v1656
    %v1658 = vpop.f32.mrb[0].mxu0
    %v1659 = vadd.f32 %v1029, %v1658
    %1660 = vmatprep.mubr.f32.mxu0 0.0
    %1661 = vmatmul.mubr.f32.gmra.mrb[0].mxu0 %v991
    %v1662 = vpop.f32.mrb[0].mxu0
    %v1663 = vadd.f32 %v1034, %v1662
    %v1664 = vpop.f32.mrb[0].mxu0
    %v1665 = vadd.f32 %v1034, %v1664
    %1666 = vmatprep.mubr.f32.mxu0 0.0
    %1667 = vmatmul.mubr.f32.gmra.mrb[0].mxu0 %v992
    %v1668 = vpop.f32.mrb[0].mxu0
    %v1669 = vadd.f32 %v1039, %v1668
    %v1670 = vpop.f32.mrb[0].mxu0
    %v1671 = vadd.f32 %v1039, %v1670
    %1672 = vmatprep.mubr.f32.mxu0 0.0
    %1673 = vmatmul.mubr.f32.gmra.mrb[0].mxu0 %v993
    %v1674 = vpop.f32.mrb[0].mxu0
    %v1675 = vadd.f32 %v1044, %v1674
    %v1676 = vpop.f32.mrb[0].mxu0
    %v1677 = vadd.f32 %v1044, %v1676
    %1678 = vmatprep.mubr.f32.mxu0 0.0
    %1679 = vmatmul.mubr.f32.gmra.mrb[0].mxu0 %v994
    %v1680 = vpop.f32.mrb[0].mxu0
    %v1681 = vadd.f32 %v1049, %v1680
    %v1682 = vpop.f32.mrb[0].mxu0
    %v1683 = vadd.f32 %v1049, %v1682
    %1684 = vmatprep.mubr.f32.mxu0 0.0
    %1685 = vmatmul.mubr.f32.gmra.mrb[0].mxu0 %v995
    %v1686 = vpop.f32.mrb[0].mxu0
    %v1687 = vadd.f32 %v1054, %v1686
    %v1688 = vpop.f32.mrb[0].mxu0
    %v1689 = vadd.f32 %v1054, %v1688
    %1690 = vmatprep.mubr.f32.mxu0 0.0
    %1691 = vmatmul.mubr.f32.gmra.mrb[0].mxu0 %v996
    %v1692 = vpop.f32.mrb[0].mxu0
    %v1693 = vadd.f32 %v1059, %v1692
    %v1694 = vpop.f32.mrb[0].mxu0
    %v1695 = vadd.f32 %v1059, %v1694
    %1696 = vmatprep.mubr.f32.mxu0 0.0
    %1697 = vmatmul.mubr.f32.gmra.mrb[0].mxu0 %v997
    %v1698 = vpop.f32.mrb[0].mxu0
    %v1699 = vadd.f32 %v1064, %v1698
    %v1700 = vpop.f32.mrb[0].mxu0
    %v1701 = vadd.f32 %v1064, %v1700
    %1702 = vmatprep.mubr.f32.mxu0 0.0
    %1703 = vmatmul.mubr.f32.gmra.mrb[0].mxu0 %v998
    %v1704 = vpop.f32.mrb[0].mxu0
    %v1705 = vadd.f32 %v1069, %v1704
    %v1706 = vpop.f32.mrb[0].mxu0
    %v1707 = vadd.f32 %v1069, %v1706
    %1708 = vmatprep.mubr.f32.mxu0 0.0
    %1709 = vmatmul.mubr.f32.gmra.mrb[0].mxu0 %v999
    %v1710 = vpop.f32.mrb[0].mxu0
    %v1711 = vadd.f32 %v1074, %v1710
    %v1712 = vpop.f32.mrb[0].mxu0
    %v1713 = vadd.f32 %v1074, %v1712
    %1714 = vmatprep.mubr.f32.mxu0 0.0
    %1715 = vmatmul.mubr.f32.gmra.mrb[0].mxu0 %v1000
    %v1716 = vpop.f32.mrb[0].mxu0
    %v1717 = vadd.f32 %v1079, %v1716
    %v1718 = vpop.f32.mrb[0].mxu0
    %v1719 = vadd.f32 %v1079, %v1718
    %1720 = vmatprep.mubr.f32.mxu0 0.0
    %1721 = vmatmul.mubr.f32.gmra.mrb[0].mxu0 %v1001
    %v1722 = vpop.f32.mrb[0].mxu0
    %v1723 = vadd.f32 %v1084, %v1722
    %v1724 = vpop.f32.mrb[0].mxu0
    %v1725 = vadd.f32 %v1084, %v1724
    %1726 = vmatprep.mubr.f32.mxu0 0.0
    %1727 = vmatmul.mubr.f32.gmra.mrb[0].mxu0 %v1002
    %v1728 = vpop.f32.mrb[0].mxu0
    %v1729 = vadd.f32 %v1089, %v1728
    %v1730 = vpop.f32.mrb[0].mxu0
    %v1731 = vadd.f32 %v1089, %v1730
    %1732 = vmatprep.mubr.f32.mxu0 0.0
    %1733 = vmatmul.mubr.f32.gmra.mrb[0].mxu0 %v1003
    %v1734 = vpop.f32.mrb[0].mxu0
    %v1735 = vadd.f32 %v1094, %v1734
    %v1736 = vpop.f32.mrb[0].mxu0
    %v1737 = vadd.f32 %v1094, %v1736
    %1738 = vmatprep.mubr.f32.mxu0 0.0
    %1739 = vmatmul.mubr.f32.gmra.mrb[0].mxu0 %v1004
    %v1740 = vpop.f32.mrb[0].mxu0
    %v1741 = vadd.f32 %v1099, %v1740
    %v1742 = vpop.f32.mrb[0].mxu0
    %v1743 = vadd.f32 %v1099, %v1742
    %1744 = vdwg.mxu0
    %v1745 = vmax.f32 %v1168, 0.0
    %v1746 = vmax.f32 %v1170, 0.0
    %v1747 = vmax.f32 %v1329, 0.0
    %v1748 = vmax.f32 %v1331, 0.0
    %v1749 = vmax.f32 %v1490, 0.0
    %v1750 = vmax.f32 %v1492, 0.0
    %v1751 = vmax.f32 %v1651, 0.0
    %v1752 = vmax.f32 %v1653, 0.0
    %v1753 = vmax.f32 %v1174, 0.0
    %v1754 = vmax.f32 %v1176, 0.0
    %v1755 = vmax.f32 %v1335, 0.0
    %v1756 = vmax.f32 %v1337, 0.0
    %v1757 = vmax.f32 %v1496, 0.0
    %v1758 = vmax.f32 %v1498, 0.0
    %v1759 = vmax.f32 %v1657, 0.0
    %v1760 = vmax.f32 %v1659, 0.0
    %v1761 = vmax.f32 %v1180, 0.0
    %v1762 = vmax.f32 %v1182, 0.0
    %v1763 = vmax.f32 %v1341, 0.0
    %v1764 = vmax.f32 %v1343, 0.0
    %v1765 = vmax.f32 %v1502, 0.0
    %v1766 = vmax.f32 %v1504, 0.0
    %v1767 = vmax.f32 %v1663, 0.0
    %v1768 = vmax.f32 %v1665, 0.0
    %v1769 = vmax.f32 %v1186, 0.0
    %v1770 = vmax.f32 %v1188, 0.0
    %v1771 = vmax.f32 %v1347, 0.0
    %v1772 = vmax.f32 %v1349, 0.0
    %v1773 = vmax.f32 %v1508, 0.0
    %v1774 = vmax.f32 %v1510, 0.0
    %v1775 = vmax.f32 %v1669, 0.0
    %v1776 = vmax.f32 %v1671, 0.0
    %v1777 = vmax.f32 %v1192, 0.0
    %v1778 = vmax.f32 %v1194, 0.0
    %v1779 = vmax.f32 %v1353, 0.0
    %v1780 = vmax.f32 %v1355, 0.0
    %v1781 = vmax.f32 %v1514, 0.0
    %v1782 = vmax.f32 %v1516, 0.0
    %v1783 = vmax.f32 %v1675, 0.0
    %v1784 = vmax.f32 %v1677, 0.0
    %v1785 = vmax.f32 %v1198, 0.0
    %v1786 = vmax.f32 %v1200, 0.0
    %v1787 = vmax.f32 %v1359, 0.0
    %v1788 = vmax.f32 %v1361, 0.0
    %v1789 = vmax.f32 %v1520, 0.0
    %v1790 = vmax.f32 %v1522, 0.0
    %v1791 = vmax.f32 %v1681, 0.0
    %v1792 = vmax.f32 %v1683, 0.0
    %v1793 = vmax.f32 %v1204, 0.0
    %v1794 = vmax.f32 %v1206, 0.0
    %v1795 = vmax.f32 %v1365, 0.0
    %v1796 = vmax.f32 %v1367, 0.0
    %v1797 = vmax.f32 %v1526, 0.0
    %v1798 = vmax.f32 %v1528, 0.0
    %v1799 = vmax.f32 %v1687, 0.0
    %v1800 = vmax.f32 %v1689, 0.0
    %v1801 = vmax.f32 %v1210, 0.0
    %v1802 = vmax.f32 %v1212, 0.0
    %v1803 = vmax.f32 %v1371, 0.0
    %v1804 = vmax.f32 %v1373, 0.0
    %v1805 = vmax.f32 %v1532, 0.0
    %v1806 = vmax.f32 %v1534, 0.0
    %v1807 = vmax.f32 %v1693, 0.0
    %v1808 = vmax.f32 %v1695, 0.0
    %v1809 = vmax.f32 %v1216, 0.0
    %v1810 = vmax.f32 %v1218, 0.0
    %v1811 = vmax.f32 %v1377, 0.0
    %v1812 = vmax.f32 %v1379, 0.0
    %v1813 = vmax.f32 %v1538, 0.0
    %v1814 = vmax.f32 %v1540, 0.0
    %v1815 = vmax.f32 %v1699, 0.0
    %v1816 = vmax.f32 %v1701, 0.0
    %v1817 = vmax.f32 %v1222, 0.0
    %v1818 = vmax.f32 %v1224, 0.0
    %v1819 = vmax.f32 %v1383, 0.0
    %v1820 = vmax.f32 %v1385, 0.0
    %v1821 = vmax.f32 %v1544, 0.0
    %v1822 = vmax.f32 %v1546, 0.0
    %v1823 = vmax.f32 %v1705, 0.0
    %v1824 = vmax.f32 %v1707, 0.0
    %v1825 = vmax.f32 %v1228, 0.0
    %v1826 = vmax.f32 %v1230, 0.0
    %v1827 = vmax.f32 %v1389, 0.0
    %v1828 = vmax.f32 %v1391, 0.0
    %v1829 = vmax.f32 %v1550, 0.0
    %v1830 = vmax.f32 %v1552, 0.0
    %v1831 = vmax.f32 %v1711, 0.0
    %v1832 = vmax.f32 %v1713, 0.0
    %v1833 = vmax.f32 %v1234, 0.0
    %v1834 = vmax.f32 %v1236, 0.0
    %v1835 = vmax.f32 %v1395, 0.0
    %v1836 = vmax.f32 %v1397, 0.0
    %v1837 = vmax.f32 %v1556, 0.0
    %v1838 = vmax.f32 %v1558, 0.0
    %v1839 = vmax.f32 %v1717, 0.0
    %v1840 = vmax.f32 %v1719, 0.0
    %v1841 = vmax.f32 %v1240, 0.0
    %v1842 = vmax.f32 %v1242, 0.0
    %v1843 = vmax.f32 %v1401, 0.0
    %v1844 = vmax.f32 %v1403, 0.0
    %v1845 = vmax.f32 %v1562, 0.0
    %v1846 = vmax.f32 %v1564, 0.0
    %v1847 = vmax.f32 %v1723, 0.0
    %v1848 = vmax.f32 %v1725, 0.0
    %v1849 = vmax.f32 %v1246, 0.0
    %v1850 = vmax.f32 %v1248, 0.0
    %v1851 = vmax.f32 %v1407, 0.0
    %v1852 = vmax.f32 %v1409, 0.0
    %v1853 = vmax.f32 %v1568, 0.0
    %v1854 = vmax.f32 %v1570, 0.0
    %v1855 = vmax.f32 %v1729, 0.0
    %v1856 = vmax.f32 %v1731, 0.0
    %v1857 = vmax.f32 %v1252, 0.0
    %v1858 = vmax.f32 %v1254, 0.0
    %v1859 = vmax.f32 %v1413, 0.0
    %v1860 = vmax.f32 %v1415, 0.0
    %v1861 = vmax.f32 %v1574, 0.0
    %v1862 = vmax.f32 %v1576, 0.0
    %v1863 = vmax.f32 %v1735, 0.0
    %v1864 = vmax.f32 %v1737, 0.0
    %v1865 = vmax.f32 %v1258, 0.0
    %v1866 = vmax.f32 %v1260, 0.0
    %v1867 = vmax.f32 %v1419, 0.0
    %v1868 = vmax.f32 %v1421, 0.0
    %v1869 = vmax.f32 %v1580, 0.0
    %v1870 = vmax.f32 %v1582, 0.0
    %v1871 = vmax.f32 %v1741, 0.0
    %v1872 = vmax.f32 %v1743, 0.0
    %v1873 = vld [vmem:[%s5] sm:$0x3]
    %v1874 = vld [vmem:[%s6] sm:$0x3]
    %1876 = vset.pattern.permute.xlu0 0
    %1877 = vperm.xlu0 %1876, %v1874
    %v1878 = vpop.permute.xlu0 %1877
    %1880 = vmatprep.subr.mxu0 %v1746
    %1881 = vmatpush1.msra.mxu0 %v1745
    %1882 = vmatprep.subr.mxu0 %v1754
    %1883 = vmatpush1.msra.mxu0 %v1753
    %1884 = vmatprep.subr.mxu0 %v1762
    %1885 = vmatpush1.msra.mxu0 %v1761
    %1886 = vmatprep.subr.mxu0 %v1770
    %1887 = vmatpush1.msra.mxu0 %v1769
    %1888 = vmatprep.subr.mxu0 %v1778
    %1889 = vmatpush1.msra.mxu0 %v1777
    %1890 = vmatprep.subr.mxu0 %v1786
    %1891 = vmatpush1.msra.mxu0 %v1785
    %1892 = vmatprep.subr.mxu0 %v1794
    %1893 = vmatpush1.msra.mxu0 %v1793
    %1894 = vmatprep.subr.mxu0 %v1802
    %1895 = vmatpush1.msra.mxu0 %v1801
    %1896 = vmatprep.subr.mxu0 %v1810
    %1897 = vmatpush1.msra.mxu0 %v1809
    %1898 = vmatprep.subr.mxu0 %v1818
    %1899 = vmatpush1.msra.mxu0 %v1817
    %1900 = vmatprep.subr.mxu0 %v1826
    %1901 = vmatpush1.msra.mxu0 %v1825
    %1902 = vmatprep.subr.mxu0 %v1834
    %1903 = vmatpush1.msra.mxu0 %v1833
    %1904 = vmatprep.subr.mxu0 %v1842
    %1905 = vmatpush1.msra.mxu0 %v1841
    %1906 = vmatprep.subr.mxu0 %v1850
    %1907 = vmatpush1.msra.mxu0 %v1849
    %1908 = vmatprep.subr.mxu0 %v1858
    %1909 = vmatpush1.msra.mxu0 %v1857
    %1910 = vmatprep.subr.mxu0 %v1866
    %1911 = vmatpush1.msra.mxu0 %v1865
    %1912 = vmatprep.subr.mxu0 0.0
    %1913 = vmatpush1.msra.mxu0 0.0
    %1914 = vmatprep.subr.mxu0 0.0
    %1915 = vmatpush1.msra.mxu0 0.0
    %1916 = vmatprep.subr.mxu0 0.0
    %1917 = vmatpush1.msra.mxu0 0.0
    %1918 = vmatprep.subr.mxu0 0.0
    %1919 = vmatpush1.msra.mxu0 0.0
    %1920 = vmatprep.subr.mxu0 0.0
    %1921 = vmatpush1.msra.mxu0 0.0
    %1922 = vmatprep.subr.mxu0 0.0
    %1923 = vmatpush1.msra.mxu0 0.0
    %1924 = vmatprep.subr.mxu0 0.0
    %1925 = vmatpush1.msra.mxu0 0.0
    %1926 = vmatprep.subr.mxu0 0.0
    %1927 = vmatpush1.msra.mxu0 0.0
    %1928 = vmatprep.subr.mxu0 0.0
    %1929 = vmatpush1.msra.mxu0 0.0
    %1930 = vmatprep.subr.mxu0 0.0
    %1931 = vmatpush1.msra.mxu0 0.0
    %1932 = vmatprep.subr.mxu0 0.0
    %1933 = vmatpush1.msra.mxu0 0.0
    %1934 = vmatprep.subr.mxu0 0.0
    %1935 = vmatpush1.msra.mxu0 0.0
    %1936 = vmatprep.subr.mxu0 0.0
    %1937 = vmatpush1.msra.mxu0 0.0
    %1938 = vmatprep.subr.mxu0 0.0
    %1939 = vmatpush1.msra.mxu0 0.0
    %1940 = vmatprep.subr.mxu0 0.0
    %1941 = vmatpush1.msra.mxu0 0.0
    %1942 = vmatprep.subr.mxu0 0.0
    %1943 = vmatpush1.msra.mxu0 0.0
    %1944 = vmatprep.mubr.f32.mxu0 0.0
    %1945 = vmatmul.mubr.f32.gmra.mrb[0].mxu0 %v1873
    %v1946 = vpop.f32.mrb[0].mxu0
    %v1947 = vadd.f32 %v1878, %v1946
    %v1948 = vpop.f32.mrb[0].mxu0
    %v1949 = vadd.f32 %v1878, %v1948
    %1950 = vdwg.mxu0
    %1951 = vmatprep.subr.mxu0 %v1748
    %1952 = vmatpush1.msra.mxu0 %v1747
    %1953 = vmatprep.subr.mxu0 %v1756
    %1954 = vmatpush1.msra.mxu0 %v1755
    %1955 = vmatprep.subr.mxu0 %v1764
    %1956 = vmatpush1.msra.mxu0 %v1763
    %1957 = vmatprep.subr.mxu0 %v1772
    %1958 = vmatpush1.msra.mxu0 %v1771
    %1959 = vmatprep.subr.mxu0 %v1780
    %1960 = vmatpush1.msra.mxu0 %v1779
    %1961 = vmatprep.subr.mxu0 %v1788
    %1962 = vmatpush1.msra.mxu0 %v1787
    %1963 = vmatprep.subr.mxu0 %v1796
    %1964 = vmatpush1.msra.mxu0 %v1795
    %1965 = vmatprep.subr.mxu0 %v1804
    %1966 = vmatpush1.msra.mxu0 %v1803
    %1967 = vmatprep.subr.mxu0 %v1812
    %1968 = vmatpush1.msra.mxu0 %v1811
    %1969 = vmatprep.subr.mxu0 %v1820
    %1970 = vmatpush1.msra.mxu0 %v1819
    %1971 = vmatprep.subr.mxu0 %v1828
    %1972 = vmatpush1.msra.mxu0 %v1827
    %1973 = vmatprep.subr.mxu0 %v1836
    %1974 = vmatpush1.msra.mxu0 %v1835
    %1975 = vmatprep.subr.mxu0 %v1844
    %1976 = vmatpush1.msra.mxu0 %v1843
    %1977 = vmatprep.subr.mxu0 %v1852
    %1978 = vmatpush1.msra.mxu0 %v1851
    %1979 = vmatprep.subr.mxu0 %v1860
    %1980 = vmatpush1.msra.mxu0 %v1859
    %1981 = vmatprep.subr.mxu0 %v1868
    %1982 = vmatpush1.msra.mxu0 %v1867
    %1983 = vmatprep.subr.mxu0 0.0
    %1984 = vmatpush1.msra.mxu0 0.0
    %1985 = vmatprep.subr.mxu0 0.0
    %1986 = vmatpush1.msra.mxu0 0.0
    %1987 = vmatprep.subr.mxu0 0.0
    %1988 = vmatpush1.msra.mxu0 0.0
    %1989 = vmatprep.subr.mxu0 0.0
    %1990 = vmatpush1.msra.mxu0 0.0
    %1991 = vmatprep.subr.mxu0 0.0
    %1992 = vmatpush1.msra.mxu0 0.0
    %1993 = vmatprep.subr.mxu0 0.0
    %1994 = vmatpush1.msra.mxu0 0.0
    %1995 = vmatprep.subr.mxu0 0.0
    %1996 = vmatpush1.msra.mxu0 0.0
    %1997 = vmatprep.subr.mxu0 0.0
    %1998 = vmatpush1.msra.mxu0 0.0
    %1999 = vmatprep.subr.mxu0 0.0
    %2000 = vmatpush1.msra.mxu0 0.0
    %2001 = vmatprep.subr.mxu0 0.0
    %2002 = vmatpush1.msra.mxu0 0.0
    %2003 = vmatprep.subr.mxu0 0.0
    %2004 = vmatpush1.msra.mxu0 0.0
    %2005 = vmatprep.subr.mxu0 0.0
    %2006 = vmatpush1.msra.mxu0 0.0
    %2007 = vmatprep.subr.mxu0 0.0
    %2008 = vmatpush1.msra.mxu0 0.0
    %2009 = vmatprep.subr.mxu0 0.0
    %2010 = vmatpush1.msra.mxu0 0.0
    %2011 = vmatprep.subr.mxu0 0.0
    %2012 = vmatpush1.msra.mxu0 0.0
    %2013 = vmatprep.subr.mxu0 0.0
    %2014 = vmatpush1.msra.mxu0 0.0
    %2015 = vmatprep.mubr.f32.mxu0 0.0
    %2016 = vmatmul.mubr.f32.gmra.mrb[0].mxu0 %v1873
    %v2017 = vpop.f32.mrb[0].mxu0
    %v2018 = vadd.f32 %v1878, %v2017
    %v2019 = vpop.f32.mrb[0].mxu0
    %v2020 = vadd.f32 %v1878, %v2019
    %2021 = vdwg.mxu0
    %2022 = vmatprep.subr.mxu0 %v1750
    %2023 = vmatpush1.msra.mxu0 %v1749
    %2024 = vmatprep.subr.mxu0 %v1758
    %2025 = vmatpush1.msra.mxu0 %v1757
    %2026 = vmatprep.subr.mxu0 %v1766
    %2027 = vmatpush1.msra.mxu0 %v1765
    %2028 = vmatprep.subr.mxu0 %v1774
    %2029 = vmatpush1.msra.mxu0 %v1773
    %2030 = vmatprep.subr.mxu0 %v1782
    %2031 = vmatpush1.msra.mxu0 %v1781
    %2032 = vmatprep.subr.mxu0 %v1790
    %2033 = vmatpush1.msra.mxu0 %v1789
    %2034 = vmatprep.subr.mxu0 %v1798
    %2035 = vmatpush1.msra.mxu0 %v1797
    %2036 = vmatprep.subr.mxu0 %v1806
    %2037 = vmatpush1.msra.mxu0 %v1805
    %2038 = vmatprep.subr.mxu0 %v1814
    %2039 = vmatpush1.msra.mxu0 %v1813
    %2040 = vmatprep.subr.mxu0 %v1822
    %2041 = vmatpush1.msra.mxu0 %v1821
    %2042 = vmatprep.subr.mxu0 %v1830
    %2043 = vmatpush1.msra.mxu0 %v1829
    %2044 = vmatprep.subr.mxu0 %v1838
    %2045 = vmatpush1.msra.mxu0 %v1837
    %2046 = vmatprep.subr.mxu0 %v1846
    %2047 = vmatpush1.msra.mxu0 %v1845
    %2048 = vmatprep.subr.mxu0 %v1854
    %2049 = vmatpush1.msra.mxu0 %v1853
    %2050 = vmatprep.subr.mxu0 %v1862
    %2051 = vmatpush1.msra.mxu0 %v1861
    %2052 = vmatprep.subr.mxu0 %v1870
    %2053 = vmatpush1.msra.mxu0 %v1869
    %2054 = vmatprep.subr.mxu0 0.0
    %2055 = vmatpush1.msra.mxu0 0.0
    %2056 = vmatprep.subr.mxu0 0.0
    %2057 = vmatpush1.msra.mxu0 0.0
    %2058 = vmatprep.subr.mxu0 0.0
    %2059 = vmatpush1.msra.mxu0 0.0
    %2060 = vmatprep.subr.mxu0 0.0
    %2061 = vmatpush1.msra.mxu0 0.0
    %2062 = vmatprep.subr.mxu0 0.0
    %2063 = vmatpush1.msra.mxu0 0.0
    %2064 = vmatprep.subr.mxu0 0.0
    %2065 = vmatpush1.msra.mxu0 0.0
    %2066 = vmatprep.subr.mxu0 0.0
    %2067 = vmatpush1.msra.mxu0 0.0
    %2068 = vmatprep.subr.mxu0 0.0
    %2069 = vmatpush1.msra.mxu0 0.0
    %2070 = vmatprep.subr.mxu0 0.0
    %2071 = vmatpush1.msra.mxu0 0.0
    %2072 = vmatprep.subr.mxu0 0.0
    %2073 = vmatpush1.msra.mxu0 0.0
    %2074 = vmatprep.subr.mxu0 0.0
    %2075 = vmatpush1.msra.mxu0 0.0
    %2076 = vmatprep.subr.mxu0 0.0
    %2077 = vmatpush1.msra.mxu0 0.0
    %2078 = vmatprep.subr.mxu0 0.0
    %2079 = vmatpush1.msra.mxu0 0.0
    %2080 = vmatprep.subr.mxu0 0.0
    %2081 = vmatpush1.msra.mxu0 0.0
    %2082 = vmatprep.subr.mxu0 0.0
    %2083 = vmatpush1.msra.mxu0 0.0
    %2084 = vmatprep.subr.mxu0 0.0
    %2085 = vmatpush1.msra.mxu0 0.0
    %2086 = vmatprep.mubr.f32.mxu0 0.0
    %2087 = vmatmul.mubr.f32.gmra.mrb[0].mxu0 %v1873
    %v2088 = vpop.f32.mrb[0].mxu0
    %v2089 = vadd.f32 %v1878, %v2088
    %v2090 = vpop.f32.mrb[0].mxu0
    %v2091 = vadd.f32 %v1878, %v2090
    %2092 = vdwg.mxu0
    %2093 = vmatprep.subr.mxu0 %v1752
    %2094 = vmatpush1.msra.mxu0 %v1751
    %2095 = vmatprep.subr.mxu0 %v1760
    %2096 = vmatpush1.msra.mxu0 %v1759
    %2097 = vmatprep.subr.mxu0 %v1768
    %2098 = vmatpush1.msra.mxu0 %v1767
    %2099 = vmatprep.subr.mxu0 %v1776
    %2100 = vmatpush1.msra.mxu0 %v1775
    %2101 = vmatprep.subr.mxu0 %v1784
    %2102 = vmatpush1.msra.mxu0 %v1783
    %2103 = vmatprep.subr.mxu0 %v1792
    %2104 = vmatpush1.msra.mxu0 %v1791
    %2105 = vmatprep.subr.mxu0 %v1800
    %2106 = vmatpush1.msra.mxu0 %v1799
    %2107 = vmatprep.subr.mxu0 %v1808
    %2108 = vmatpush1.msra.mxu0 %v1807
    %2109 = vmatprep.subr.mxu0 %v1816
    %2110 = vmatpush1.msra.mxu0 %v1815
    %2111 = vmatprep.subr.mxu0 %v1824
    %2112 = vmatpush1.msra.mxu0 %v1823
    %2113 = vmatprep.subr.mxu0 %v1832
    %2114 = vmatpush1.msra.mxu0 %v1831
    %2115 = vmatprep.subr.mxu0 %v1840
    %2116 = vmatpush1.msra.mxu0 %v1839
    %2117 = vmatprep.subr.mxu0 %v1848
    %2118 = vmatpush1.msra.mxu0 %v1847
    %2119 = vmatprep.subr.mxu0 %v1856
    %2120 = vmatpush1.msra.mxu0 %v1855
    %2121 = vmatprep.subr.mxu0 %v1864
    %2122 = vmatpush1.msra.mxu0 %v1863
    %2123 = vmatprep.subr.mxu0 %v1872
    %2124 = vmatpush1.msra.mxu0 %v1871
    %2125 = vmatprep.subr.mxu0 0.0
    %2126 = vmatpush1.msra.mxu0 0.0
    %2127 = vmatprep.subr.mxu0 0.0
    %2128 = vmatpush1.msra.mxu0 0.0
    %2129 = vmatprep.subr.mxu0 0.0
    %2130 = vmatpush1.msra.mxu0 0.0
    %2131 = vmatprep.subr.mxu0 0.0
    %2132 = vmatpush1.msra.mxu0 0.0
    %2133 = vmatprep.subr.mxu0 0.0
    %2134 = vmatpush1.msra.mxu0 0.0
    %2135 = vmatprep.subr.mxu0 0.0
    %2136 = vmatpush1.msra.mxu0 0.0
    %2137 = vmatprep.subr.mxu0 0.0
    %2138 = vmatpush1.msra.mxu0 0.0
    %2139 = vmatprep.subr.mxu0 0.0
    %2140 = vmatpush1.msra.mxu0 0.0
    %2141 = vmatprep.subr.mxu0 0.0
    %2142 = vmatpush1.msra.mxu0 0.0
    %2143 = vmatprep.subr.mxu0 0.0
    %2144 = vmatpush1.msra.mxu0 0.0
    %2145 = vmatprep.subr.mxu0 0.0
    %2146 = vmatpush1.msra.mxu0 0.0
    %2147 = vmatprep.subr.mxu0 0.0
    %2148 = vmatpush1.msra.mxu0 0.0
    %2149 = vmatprep.subr.mxu0 0.0
    %2150 = vmatpush1.msra.mxu0 0.0
    %2151 = vmatprep.subr.mxu0 0.0
    %2152 = vmatpush1.msra.mxu0 0.0
    %2153 = vmatprep.subr.mxu0 0.0
    %2154 = vmatpush1.msra.mxu0 0.0
    %2155 = vmatprep.subr.mxu0 0.0
    %2156 = vmatpush1.msra.mxu0 0.0
    %2157 = vmatprep.mubr.f32.mxu0 0.0
    %2158 = vmatmul.mubr.f32.gmra.mrb[0].mxu0 %v1873
    %v2159 = vpop.f32.mrb[0].mxu0
    %v2160 = vadd.f32 %v1878, %v2159
    %v2161 = vpop.f32.mrb[0].mxu0
    %v2162 = vadd.f32 %v1878, %v2161
    %2163 = vdwg.mxu0
    %v2164 = vsub.f32 0.0, %v1947
    %v2165 = vsub.f32 0.0, %v1949
    %v2166 = vsub.f32 0.0, %v2018
    %v2167 = vsub.f32 0.0, %v2020
    %v2168 = vsub.f32 0.0, %v2089
    %v2169 = vsub.f32 0.0, %v2091
    %v2170 = vsub.f32 0.0, %v2160
    %v2171 = vsub.f32 0.0, %v2162
    %v2172 = vmul.f32 %v2164, 1.442695
    %v2173 = vpow.pop %v2172
    %v2174 = vmul.f32 %v2165, 1.442695
    %v2175 = vpow.pop %v2174
    %v2176 = vmul.f32 %v2166, 1.442695
    %v2177 = vpow.pop %v2176
    %v2178 = vmul.f32 %v2167, 1.442695
    %v2179 = vpow.pop %v2178
    %v2180 = vmul.f32 %v2168, 1.442695
    %v2181 = vpow.pop %v2180
    %v2182 = vmul.f32 %v2169, 1.442695
    %v2183 = vpow.pop %v2182
    %v2184 = vmul.f32 %v2170, 1.442695
    %v2185 = vpow.pop %v2184
    %v2186 = vmul.f32 %v2171, 1.442695
    %v2187 = vpow.pop %v2186
    %v2188 = vadd.f32 %v2173, 1.0
    %v2189 = vadd.f32 %v2175, 1.0
    %v2190 = vadd.f32 %v2177, 1.0
    %v2191 = vadd.f32 %v2179, 1.0
    %v2192 = vadd.f32 %v2181, 1.0
    %v2193 = vadd.f32 %v2183, 1.0
    %v2194 = vadd.f32 %v2185, 1.0
    %v2195 = vadd.f32 %v2187, 1.0
    %v2196 = vrcp.pop %v2188
    %v2197 = vrcp.pop %v2189
    %v2198 = vrcp.pop %v2190
    %v2199 = vrcp.pop %v2191
    %v2200 = vrcp.pop %v2192
    %v2201 = vrcp.pop %v2193
    %v2202 = vrcp.pop %v2194
    %v2203 = vrcp.pop %v2195
    %v2212 = vcombine.low %v2196, %v2197
    %v2213 = vcombine.low %v2198, %v2199
    %v2215 = vunpack.c.l.s4 1983009808
    %v2216 = vunpack.c.0.s8 %v2215
    %v2217 = vlaneseq
    %v2218 = vshrl.u32 %v2217, 7
    %v2219 = vsub.s32 %v2216, %v2218
    %v2220 = vrot.slane %v2212, %v2219
    %v2222 = vunpack.c.l.s4 1983009808
    %v2223 = vunpack.c.0.s8 %v2222
    %v2224 = vlaneseq
    %v2225 = vshrl.u32 %v2224, 7
    %v2226 = vsub.s32 %v2223, %v2225
    %v2227 = vrot.slane %v2213, %v2226
    %v2228 = vcombine.low %v2220, %v2227
    %v2229 = vcombine.low %v2200, %v2201
    %v2230 = vcombine.low %v2202, %v2203
    %v2232 = vunpack.c.l.s4 1983009808
    %v2233 = vunpack.c.0.s8 %v2232
    %v2234 = vlaneseq
    %v2235 = vshrl.u32 %v2234, 7
    %v2236 = vsub.s32 %v2233, %v2235
    %v2237 = vrot.slane %v2229, %v2236
    %v2239 = vunpack.c.l.s4 1983009808
    %v2240 = vunpack.c.0.s8 %v2239
    %v2241 = vlaneseq
    %v2242 = vshrl.u32 %v2241, 7
    %v2243 = vsub.s32 %v2240, %v2242
    %v2244 = vrot.slane %v2230, %v2243
    %v2245 = vcombine.low %v2237, %v2244
    %2248 = vst [vmem:[#allocation2] sm:$0xff] %v2228
    %2249 = vst [vmem:[#allocation2 + $0x8] sm:$0xff] %v2245
    // Predicated region
    $region30: #{actor_forward.1} parent=1 // pred_check
      _
    $region31: #{actor_forward.1} parent=1 // pred_check_branch
      %2251 = sbr.rel (0) target = $region33
    $region32: #{actor_forward.1} parent=1 // pred_region
      %s2253 = ssub.s32 256, 256
      %2254 = vsyncadd [#allocation3], %s2253
      %s2256 = sshll.u32 [#allocation2], 4
      %s2257 = int_to_ptr.vmem [resolvable:$true] %s2256
      %2259 = dma.vmem_to_hbm [thread:$0]  %s2257, 256, %s7, [#allocation3]
    $region33: #{actor_forward.1} parent=1 // pred_fallthru
      _
    // Predicated region
    $region34: #{actor_forward.1} parent=1 // pred_check
      _
    $region35: #{actor_forward.1} parent=1 // pred_check_branch
      %2261 = sbr.rel (0) target = $region37
    $region36: #{actor_forward.1} parent=1 // pred_region
      %2262 = dma.done [#allocation3], 256
    $region37: #{actor_forward.1} parent=1 // pred_fallthru
      _
    %2263 = vsyncpa [#allocation3], 1

</llo_original>
